<compile_context>
chip_gen: v6e
topology: v6e:2x2x1
jax: 0.10.0
libtpu: 0.0.40
codegen_flags: <defaults>
</compile_context>

<pallas_src>
import jax
import jax.numpy as jnp
import numpy as np
from jax import lax
from jax.experimental import pallas as pl
from jax.experimental.pallas import tpu as pltpu

EPS = 1e-5
LEAKY_SLOPE = 0.01   # nn.LeakyReLU default negative_slope; Conv_3's `alpha` arg is never used
LANE = 128


def _round_up(v, m):
    return (v + m - 1) // m * m


# ---------------- Pallas kernel ----------------

def _make_conv_bn_lrelu_kernel(kh, kw, stride, oh, ow, oc8, inv_m):
    """Two-phase fused kernel: phase 0 = conv (one big-K matmul) + stats, phase 1 = BN apply."""
    ohw = oh * ow
    h_span = (oh - 1) * stride + 1
    w_span = (ow - 1) * stride + 1

    def kernel(x_ref, w_ref, gamma_ref, beta_ref, o_ref, y_ref, sum_ref, ssq_ref):
        phase = pl.program_id(0)
        img = pl.program_id(1)

        # -------- phase 0: conv for this image + per-channel partial BN stats --------
        @pl.when(phase == 0)
        def _conv_phase():
            @pl.when(img == 0)
            def _():
                sum_ref[...] = jnp.zeros_like(sum_ref)
                ssq_ref[...] = jnp.zeros_like(ssq_ref)

            xwin = x_ref[...]                                   # (Hp, Wp, C) bf16 halo window
            c = xwin.shape[-1]
            # im2col in VMEM: concat the KH*KW shifted taps along lanes -> ONE matmul,
            # K = KH*KW*C (instead of KH*KW separate K=C matmuls + accumulate passes).
            taps = []
            for i in range(kh):
                for j in range(kw):
                    tap = xwin[i:i + h_span:stride, j:j + w_span:stride, :]   # (OH, OW, C)
                    taps.append(tap.reshape(ohw, c))
            patches = jnp.concatenate(taps, axis=-1)            # (OHW, KH*KW*C) bf16
            acc = jnp.dot(patches, w_ref[...],
                          preferred_element_type=jnp.float32)   # (OHW, OCp) f32 on the MXU
            y_ref[img] = acc                                    # VMEM-resident conv output

            # Per-step BN partial stats from the in-register result (no later full re-scan).
            sum_ref[...] += jnp.sum(acc, axis=0, keepdims=True)
            ssq_ref[...] += jnp.sum(acc * acc, axis=0, keepdims=True)

        # -------- phase 1: BN(batch stats) + LeakyReLU + lane-dense NCHW-flat store --------
        @pl.when(phase == 1)
        def _bn_phase():
            y = y_ref[img]                                      # (OHW, OCp) f32
            mean = sum_ref[...] * inv_m                         # (1, OCp)
            var = jnp.maximum(ssq_ref[...] * inv_m - mean * mean, 0.0)
            scale = gamma_ref[...] * lax.rsqrt(var + EPS)       # (1, OCp)
            shift = beta_ref[...] - mean * scale
            z = y * scale + shift
            z = jnp.where(z >= 0, z, LEAKY_SLOPE * z)
            # (OHW, OCp) -> (OC8, OHW): output block is NCHW-flat, stores are unmasked/lane-dense.
            o_ref[...] = z.T[:oc8, :]

    return kernel


# ---------------- JAX wrapper ----------------

def conv3_forward(x, weight, bias, gamma, beta, stride, padding):
    """NCHW Conv2d(+bias) -> BatchNorm2d(training batch stats) -> LeakyReLU, one pallas_call."""
    del bias  # per-channel conv bias is exactly cancelled by the BN mean subtraction
    n, c, h, w = x.shape
    oc = weight.shape[0]
    kh, kw = int(weight.shape[2]), int(weight.shape[3])
    oh = (h + 2 * padding - kh) // stride + 1
    ow = (w + 2 * padding - kw) // stride + 1
    ohw = oh * ow
    k_dim = kh * kw * c
    ocp = _round_up(oc, LANE)                 # matmul N dim, lane-dense (>=256 for big OC on v6e+)
    oc8 = _round_up(oc, 8)                    # HBM output channel padding (sublane granule only)
    hp, wp = h + 2 * padding, w + 2 * padding

    # --- generation-aware VMEM budgeting (v7x has 64 MiB/TC vs 128 MiB on v5e/v6e) ---
    try:
        vmem_cap = int(pltpu.get_tpu_info().vmem_capacity_bytes)
    except Exception:
        vmem_cap = 64 * 1024 * 1024           # conservative fallback (v7x per-core)
    y_bytes = n * ohw * ocp * 4                                     # resident conv output scratch
    x_tile_bytes = hp * _round_up(wp, 16) * LANE * 2                # lane-padded bf16 halo tile
    o_tile_bytes = _round_up(oc8, 8) * _round_up(ohw, LANE) * 4
    w_tile_bytes = _round_up(k_dim, 16) * ocp * 2
    vmem_needed = y_bytes + 2 * x_tile_bytes + 2 * o_tile_bytes + w_tile_bytes + (1 << 20)
    # TODO(synk): two-pass HBM-staged fallback when the fused VMEM-resident path does not fit.
    assert vmem_needed <= (vmem_cap * 3) // 5, "conv output too large for fused VMEM-resident BN"
    vmem_limit = int(min((vmem_cap * 3) // 4, max(2 * vmem_needed, 32 * 1024 * 1024)))

    # NCHW -> NHWC with spatial halo padding; bf16 MXU operands (f32 accumulation in-kernel).
    xp = jnp.pad(jnp.transpose(x, (0, 2, 3, 1)),
                 ((0, 0), (padding, padding), (padding, padding), (0, 0))).astype(jnp.bfloat16)

    # (OC, C, KH, KW) -> (KH*KW*C, OCp); K ordering (i, j, c) matches the in-kernel tap concat.
    w_k = jnp.transpose(weight, (2, 3, 1, 0)).reshape(k_dim, oc)
    w_k = jnp.pad(w_k, ((0, 0), (0, ocp - oc))).astype(jnp.bfloat16)
    gamma_p = jnp.pad(gamma.astype(jnp.float32).reshape(1, oc), ((0, 0), (0, ocp - oc)))
    beta_p = jnp.pad(beta.astype(jnp.float32).reshape(1, oc), ((0, 0), (0, ocp - oc)))

    kernel = _make_conv_bn_lrelu_kernel(kh, kw, stride, oh, ow, oc8, 1.0 / float(n * ohw))

    out = pl.pallas_call(
        kernel,
        out_shape=jax.ShapeDtypeStruct((n, oc8, ohw), jnp.float32),
        grid_spec=pltpu.PrefetchScalarGridSpec(
            num_scalar_prefetch=0,
            grid=(2, n),                       # phase 0: conv + stats; phase 1: BN apply + store
            in_specs=[
                # one image + halo; phase 1 pins block 0 (no per-step refetch of x)
                pl.BlockSpec((None, hp, wp, c), lambda p, b: (b * (1 - p), 0, 0, 0)),
                pl.BlockSpec((k_dim, ocp), lambda p, b: (0, 0)),   # resident packed weights
                pl.BlockSpec((1, ocp), lambda p, b: (0, 0)),       # gamma
                pl.BlockSpec((1, ocp), lambda p, b: (0, 0)),       # beta
            ],
            # never written in phase 0 (index pinned to 0), written & flushed per image in phase 1
            out_specs=pl.BlockSpec((None, oc8, ohw), lambda p, b: (b * p, 0, 0)),
            scratch_shapes=[
                pltpu.VMEM((n, ohw, ocp), jnp.float32),   # VMEM-resident conv output
                pltpu.VMEM((1, ocp), jnp.float32),        # per-channel sum
                pltpu.VMEM((1, ocp), jnp.float32),        # per-channel sum of squares
            ],
        ),
        compiler_params=pltpu.CompilerParams(
            dimension_semantics=("arbitrary", "arbitrary"),
            vmem_limit_bytes=vmem_limit,
        ),
    )(xp, w_k, gamma_p, beta_p)

    # (N, OC8, OH*OW) is already NCHW-flat: slice off channel padding, free reshape, no transpose.
    return out[:, :oc, :].reshape(n, oc, oh, ow)


# ---------------- Reference & test ----------------

def _reference(x, weight, bias, gamma, beta, stride, padding, conv_dtype=jnp.float32):
    xq = x.astype(conv_dtype).astype(jnp.float32)
    wq = weight.astype(conv_dtype).astype(jnp.float32)
    y = lax.conv_general_dilated(
        xq, wq, window_strides=(stride, stride),
        padding=[(padding, padding), (padding, padding)],
        dimension_numbers=("NCHW", "OIHW", "NCHW"))
    y = y + bias[None, :, None, None]
    mean = jnp.mean(y, axis=(0, 2, 3), keepdims=True)
    var = jnp.mean((y - mean) ** 2, axis=(0, 2, 3), keepdims=True)
    z = (y - mean) * lax.rsqrt(var + EPS) * gamma[None, :, None, None] + beta[None, :, None, None]
    return jnp.where(z >= 0, z, LEAKY_SLOPE * z)


if __name__ == "__main__":
    key = jax.random.PRNGKey(0)
    N, C, H, W = 2, 4, 16, 16
    OC, KH, KW, STRIDE, PAD = 8, 3, 3, 1, 1

    kx, kw_, kb = jax.random.split(key, 3)
    x = jax.random.normal(kx, (N, C, H, W), dtype=jnp.float32)

    # Deterministic synthetic params (Conv2d init: U(-1/sqrt(fan_in), ..); BN: gamma=1, beta=0).
    fan_in = C * KH * KW
    bound = 1.0 / float(np.sqrt(fan_in))
    weight = jax.random.uniform(kw_, (OC, C, KH, KW), minval=-bound, maxval=bound,
                                dtype=jnp.float32)
    bias = jax.random.uniform(kb, (OC,), minval=-bound, maxval=bound, dtype=jnp.float32)
    gamma = jnp.ones((OC,), jnp.float32)
    beta = jnp.zeros((OC,), jnp.float32)

    out = jax.block_until_ready(conv3_forward(x, weight, bias, gamma, beta, STRIDE, PAD))
    OH = (H + 2 * PAD - KH) // STRIDE + 1
    OW = (W + 2 * PAD - KW) // STRIDE + 1
    assert out.shape == (N, OC, OH, OW)

    # Tight check: reference whose conv operands are rounded to bf16 exactly like the kernel's
    # MXU operands (f32 accumulation in both) -> only summation-order / rsqrt noise remains.
    ref_bf16 = _reference(x, weight, bias, gamma, beta, STRIDE, PAD, conv_dtype=jnp.bfloat16)
    np.testing.assert_allclose(np.asarray(out), np.asarray(ref_bf16), atol=2e-3, rtol=2e-3)

    # Looser check against the pure-f32 module semantics (slack covers bf16 operand rounding).
    ref_f32 = _reference(x, weight, bias, gamma, beta, STRIDE, PAD, conv_dtype=jnp.float32)
    np.testing.assert_allclose(np.asarray(out), np.asarray(ref_f32), atol=2e-2, rtol=2e-2)

    print("KERNEL_OK")
</pallas_src>

<mosaic_0001>
module attributes {stable_mosaic.version = 11 : i64} {
  func.func @kernel(%arg0: i32, %arg1: i32, %arg2: memref<1x18x18x4xbf16, #tpu.memory_space<vmem>>, %arg3: memref<36x128xbf16, #tpu.memory_space<vmem>>, %arg4: memref<1x128xf32, #tpu.memory_space<vmem>>, %arg5: memref<1x128xf32, #tpu.memory_space<vmem>>, %arg6: memref<1x8x256xf32, #tpu.memory_space<vmem>>, %arg7: memref<2x256x128xf32, #tpu.memory_space<vmem>>, %arg8: memref<1x128xf32, #tpu.memory_space<vmem>>, %arg9: memref<1x128xf32, #tpu.memory_space<vmem>>) attributes {dimension_semantics = [#tpu.dimension_semantics<arbitrary>, #tpu.dimension_semantics<arbitrary>], iteration_bounds = array<i64: 2, 2>, scalar_prefetch = 0 : i64, scratch_operands = 3 : i64, tpu.core_type = #tpu.core_type<tc>, window_params = [{transform_indices = @transform_0, window_bounds = array<i64: 1, 18, 18, 4>}, {pipeline_mode = #tpu.pipeline_mode<synchronous>, transform_indices = @transform_1, window_bounds = array<i64: 36, 128>}, {pipeline_mode = #tpu.pipeline_mode<synchronous>, transform_indices = @transform_2, window_bounds = array<i64: 1, 128>}, {pipeline_mode = #tpu.pipeline_mode<synchronous>, transform_indices = @transform_3, window_bounds = array<i64: 1, 128>}, {transform_indices = @transform_4, window_bounds = array<i64: 1, 8, 256>}]} {
    %c0_i32 = arith.constant 0 : i32
    %0 = arith.cmpi eq, %arg0, %c0_i32 : i32
    %1 = arith.extui %0 : i1 to i32
    %c0_i32_0 = arith.constant 0 : i32
    %2 = arith.cmpi ne, %1, %c0_i32_0 : i32
    scf.if %2 {
      %c0_i32_2 = arith.constant 0 : i32
      %6 = arith.cmpi eq, %arg1, %c0_i32_2 : i32
      %7 = arith.extui %6 : i1 to i32
      %c0_i32_3 = arith.constant 0 : i32
      %8 = arith.cmpi ne, %7, %c0_i32_3 : i32
      scf.if %8 {
        %cst_21 = arith.constant 0.000000e+00 : f32
        %47 = vector.broadcast %cst_21 : f32 to vector<1x128xf32>
        %c0_22 = arith.constant 0 : index
        %c0_23 = arith.constant 0 : index
        %48 = vector.load %arg8[%c0_22, %c0_23] : memref<1x128xf32, #tpu.memory_space<vmem>>, vector<1x128xf32>
        tpu.vector_store %arg8[%c0_22, %c0_23], %47 {strides = array<i32>} : memref<1x128xf32, #tpu.memory_space<vmem>>, vector<1x128xf32>,
        %cst_24 = arith.constant 0.000000e+00 : f32
        %49 = vector.broadcast %cst_24 : f32 to vector<1x128xf32>
        %c0_25 = arith.constant 0 : index
        %c0_26 = arith.constant 0 : index
        %50 = vector.load %arg9[%c0_25, %c0_26] : memref<1x128xf32, #tpu.memory_space<vmem>>, vector<1x128xf32>
        tpu.vector_store %arg9[%c0_25, %c0_26], %49 {strides = array<i32>} : memref<1x128xf32, #tpu.memory_space<vmem>>, vector<1x128xf32>,
      } else {
      }
      %c0 = arith.constant 0 : index
      %c0_4 = arith.constant 0 : index
      %c0_5 = arith.constant 0 : index
      %c0_6 = arith.constant 0 : index
      %9 = vector.load %arg2[%c0, %c0_4, %c0_5, %c0_6] : memref<1x18x18x4xbf16, #tpu.memory_space<vmem>>, vector<1x18x18x4xbf16>
      %10 = vector.shape_cast %9 : vector<1x18x18x4xbf16> to vector<18x18x4xbf16>
      %11 = vector.extract_strided_slice %10 {offsets = [0, 0, 0], sizes = [16, 16, 4], strides = [1, 1, 1]} : vector<18x18x4xbf16> to vector<16x16x4xbf16>
      %12 = vector.shape_cast %11 : vector<16x16x4xbf16> to vector<256x4xbf16>
      %13 = vector.extract_strided_slice %10 {offsets = [0, 1, 0], sizes = [16, 16, 4], strides = [1, 1, 1]} : vector<18x18x4xbf16> to vector<16x16x4xbf16>
      %14 = vector.shape_cast %13 : vector<16x16x4xbf16> to vector<256x4xbf16>
      %15 = vector.extract_strided_slice %10 {offsets = [0, 2, 0], sizes = [16, 16, 4], strides = [1, 1, 1]} : vector<18x18x4xbf16> to vector<16x16x4xbf16>
      %16 = vector.shape_cast %15 : vector<16x16x4xbf16> to vector<256x4xbf16>
      %17 = vector.extract_strided_slice %10 {offsets = [1, 0, 0], sizes = [16, 16, 4], strides = [1, 1, 1]} : vector<18x18x4xbf16> to vector<16x16x4xbf16>
      %18 = vector.shape_cast %17 : vector<16x16x4xbf16> to vector<256x4xbf16>
      %19 = vector.extract_strided_slice %10 {offsets = [1, 1, 0], sizes = [16, 16, 4], strides = [1, 1, 1]} : vector<18x18x4xbf16> to vector<16x16x4xbf16>
      %20 = vector.shape_cast %19 : vector<16x16x4xbf16> to vector<256x4xbf16>
      %21 = vector.extract_strided_slice %10 {offsets = [1, 2, 0], sizes = [16, 16, 4], strides = [1, 1, 1]} : vector<18x18x4xbf16> to vector<16x16x4xbf16>
      %22 = vector.shape_cast %21 : vector<16x16x4xbf16> to vector<256x4xbf16>
      %23 = vector.extract_strided_slice %10 {offsets = [2, 0, 0], sizes = [16, 16, 4], strides = [1, 1, 1]} : vector<18x18x4xbf16> to vector<16x16x4xbf16>
      %24 = vector.shape_cast %23 : vector<16x16x4xbf16> to vector<256x4xbf16>
      %25 = vector.extract_strided_slice %10 {offsets = [2, 1, 0], sizes = [16, 16, 4], strides = [1, 1, 1]} : vector<18x18x4xbf16> to vector<16x16x4xbf16>
      %26 = vector.shape_cast %25 : vector<16x16x4xbf16> to vector<256x4xbf16>
      %27 = vector.extract_strided_slice %10 {offsets = [2, 2, 0], sizes = [16, 16, 4], strides = [1, 1, 1]} : vector<18x18x4xbf16> to vector<16x16x4xbf16>
      %28 = vector.shape_cast %27 : vector<16x16x4xbf16> to vector<256x4xbf16>
      %29 = tpu.concatenate %12, %14, %16, %18, %20, %22, %24, %26, %28 in 1 : vector<256x4xbf16>, vector<256x4xbf16>, vector<256x4xbf16>, vector<256x4xbf16>, vector<256x4xbf16>, vector<256x4xbf16>, vector<256x4xbf16>, vector<256x4xbf16>, vector<256x4xbf16> -> vector<256x36xbf16>
      %c0_7 = arith.constant 0 : index
      %c0_8 = arith.constant 0 : index
      %30 = vector.load %arg3[%c0_7, %c0_8] : memref<36x128xbf16, #tpu.memory_space<vmem>>, vector<36x128xbf16>
      %cst = arith.constant dense<0.000000e+00> : vector<256x128xf32>
      %31 = tpu.matmul %29, %30, %cst {dimension_numbers = #tpu.dot_dimension_numbers<[1], [0], [0], [1], [0, 0, 1, 1], [], []>} : vector<256x36xbf16>, vector<36x128xbf16>, vector<256x128xf32> -> vector<256x128xf32>
      %32 = arith.index_cast %arg1 : i32 to index
      %c0_9 = arith.constant 0 : index
      %c0_10 = arith.constant 0 : index
      %33 = vector.load %arg7[%32, %c0_9, %c0_10] : memref<2x256x128xf32, #tpu.memory_space<vmem>>, vector<1x256x128xf32>
      %34 = vector.shape_cast %33 : vector<1x256x128xf32> to vector<256x128xf32>
      %35 = vector.shape_cast %31 : vector<256x128xf32> to vector<1x256x128xf32>
      tpu.vector_store %arg7[%32, %c0_9, %c0_10], %35 {strides = array<i32>} : memref<2x256x128xf32, #tpu.memory_space<vmem>>, vector<1x256x128xf32>,
      %c0_11 = arith.constant 0 : index
      %c0_12 = arith.constant 0 : index
      %36 = vector.load %arg8[%c0_11, %c0_12] : memref<1x128xf32, #tpu.memory_space<vmem>>, vector<1x128xf32>
      %cst_13 = arith.constant dense<0.000000e+00> : vector<128xf32>
      %37 = vector.multi_reduction <add>, %31, %cst_13 [0] : vector<256x128xf32> to vector<128xf32>
      %38 = vector.shape_cast %37 : vector<128xf32> to vector<1x128xf32>
      %39 = arith.addf %36, %38 : vector<1x128xf32>
      %c0_14 = arith.constant 0 : index
      %c0_15 = arith.constant 0 : index
      %40 = vector.load %arg8[%c0_14, %c0_15] : memref<1x128xf32, #tpu.memory_space<vmem>>, vector<1x128xf32>
      tpu.vector_store %arg8[%c0_14, %c0_15], %39 {strides = array<i32>} : memref<1x128xf32, #tpu.memory_space<vmem>>, vector<1x128xf32>,
      %c0_16 = arith.constant 0 : index
      %c0_17 = arith.constant 0 : index
      %41 = vector.load %arg9[%c0_16, %c0_17] : memref<1x128xf32, #tpu.memory_space<vmem>>, vector<1x128xf32>
      %42 = arith.mulf %31, %31 : vector<256x128xf32>
      %cst_18 = arith.constant dense<0.000000e+00> : vector<128xf32>
      %43 = vector.multi_reduction <add>, %42, %cst_18 [0] : vector<256x128xf32> to vector<128xf32>
      %44 = vector.shape_cast %43 : vector<128xf32> to vector<1x128xf32>
      %45 = arith.addf %41, %44 : vector<1x128xf32>
      %c0_19 = arith.constant 0 : index
      %c0_20 = arith.constant 0 : index
      %46 = vector.load %arg9[%c0_19, %c0_20] : memref<1x128xf32, #tpu.memory_space<vmem>>, vector<1x128xf32>
      tpu.vector_store %arg9[%c0_19, %c0_20], %45 {strides = array<i32>} : memref<1x128xf32, #tpu.memory_space<vmem>>, vector<1x128xf32>,
    } else {
    }
    %c1_i32 = arith.constant 1 : i32
    %3 = arith.cmpi eq, %arg0, %c1_i32 : i32
    %4 = arith.extui %3 : i1 to i32
    %c0_i32_1 = arith.constant 0 : i32
    %5 = arith.cmpi ne, %4, %c0_i32_1 : i32
    scf.if %5 {
      %6 = arith.index_cast %arg1 : i32 to index
      %c0 = arith.constant 0 : index
      %c0_2 = arith.constant 0 : index
      %7 = vector.load %arg7[%6, %c0, %c0_2] : memref<2x256x128xf32, #tpu.memory_space<vmem>>, vector<1x256x128xf32>
      %8 = vector.shape_cast %7 : vector<1x256x128xf32> to vector<256x128xf32>
      %c0_3 = arith.constant 0 : index
      %c0_4 = arith.constant 0 : index
      %9 = vector.load %arg8[%c0_3, %c0_4] : memref<1x128xf32, #tpu.memory_space<vmem>>, vector<1x128xf32>
      %cst = arith.constant 0.001953125 : f32
      %10 = vector.broadcast %cst : f32 to vector<1x128xf32>
      %11 = arith.mulf %9, %10 : vector<1x128xf32>
      %c0_5 = arith.constant 0 : index
      %c0_6 = arith.constant 0 : index
      %12 = vector.load %arg9[%c0_5, %c0_6] : memref<1x128xf32, #tpu.memory_space<vmem>>, vector<1x128xf32>
      %cst_7 = arith.constant 0.001953125 : f32
      %13 = vector.broadcast %cst_7 : f32 to vector<1x128xf32>
      %14 = arith.mulf %12, %13 : vector<1x128xf32>
      %15 = arith.mulf %11, %11 : vector<1x128xf32>
      %16 = arith.subf %14, %15 : vector<1x128xf32>
      %cst_8 = arith.constant 0.000000e+00 : f32
      %17 = vector.broadcast %cst_8 : f32 to vector<1x128xf32>
      %18 = arith.maximumf %16, %17 : vector<1x128xf32>
      %c0_9 = arith.constant 0 : index
      %c0_10 = arith.constant 0 : index
      %19 = vector.load %arg4[%c0_9, %c0_10] : memref<1x128xf32, #tpu.memory_space<vmem>>, vector<1x128xf32>
      %cst_11 = arith.constant 9.99999974E-6 : f32
      %20 = vector.broadcast %cst_11 : f32 to vector<1x128xf32>
      %21 = arith.addf %18, %20 : vector<1x128xf32>
      %22 = math.rsqrt %21 : vector<1x128xf32>
      %23 = arith.mulf %19, %22 : vector<1x128xf32>
      %c0_12 = arith.constant 0 : index
      %c0_13 = arith.constant 0 : index
      %24 = vector.load %arg5[%c0_12, %c0_13] : memref<1x128xf32, #tpu.memory_space<vmem>>, vector<1x128xf32>
      %25 = arith.mulf %11, %23 : vector<1x128xf32>
      %26 = arith.subf %24, %25 : vector<1x128xf32>
      %27 = vector.broadcast %23 : vector<1x128xf32> to vector<256x128xf32>
      %28 = arith.mulf %8, %27 : vector<256x128xf32>
      %29 = vector.broadcast %26 : vector<1x128xf32> to vector<256x128xf32>
      %30 = arith.addf %28, %29 : vector<256x128xf32>
      %cst_14 = arith.constant 0.000000e+00 : f32
      %31 = vector.broadcast %cst_14 : f32 to vector<256x128xf32>
      %32 = arith.cmpf oge, %30, %31 : vector<256x128xf32>
      %cst_15 = arith.constant 0.00999999977 : f32
      %33 = vector.broadcast %cst_15 : f32 to vector<256x128xf32>
      %34 = arith.mulf %33, %30 : vector<256x128xf32>
      %35 = arith.select %32, %30, %34 : vector<256x128xi1>, vector<256x128xf32>
      %36 = tpu.transpose %35, [1, 0] : vector<256x128xf32> -> vector<128x256xf32>
      %37 = vector.extract_strided_slice %36 {offsets = [0, 0], sizes = [8, 256], strides = [1, 1]} : vector<128x256xf32> to vector<8x256xf32>
      %c0_16 = arith.constant 0 : index
      %c0_17 = arith.constant 0 : index
      %c0_18 = arith.constant 0 : index
      %38 = vector.load %arg6[%c0_16, %c0_17, %c0_18] : memref<1x8x256xf32, #tpu.memory_space<vmem>>, vector<1x8x256xf32>
      %39 = vector.shape_cast %38 : vector<1x8x256xf32> to vector<8x256xf32>
      %40 = vector.shape_cast %37 : vector<8x256xf32> to vector<1x8x256xf32>
      tpu.vector_store %arg6[%c0_16, %c0_17, %c0_18], %40 {strides = array<i32>} : memref<1x8x256xf32, #tpu.memory_space<vmem>>, vector<1x8x256xf32>,
    } else {
    }
    return
  }
  func.func @transform_0(%arg0: i32, %arg1: i32) -> (i32, i32, i32, i32) {
    %c1_i32 = arith.constant 1 : i32
    %0 = arith.subi %c1_i32, %arg0 : i32
    %1 = arith.muli %arg1, %0 : i32
    %c0_i32 = arith.constant 0 : i32
    %c0_i32_0 = arith.constant 0 : i32
    %c0_i32_1 = arith.constant 0 : i32
    %c0_i32_2 = arith.constant 0 : i32
    return %1, %c0_i32, %c0_i32_0, %c0_i32_1 : i32, i32, i32, i32
  }
  func.func @transform_1(%arg0: i32, %arg1: i32) -> (i32, i32) {
    %c0_i32 = arith.constant 0 : i32
    %c0_i32_0 = arith.constant 0 : i32
    %c0_i32_1 = arith.constant 0 : i32
    return %c0_i32, %c0_i32_0 : i32, i32
  }
  func.func @transform_2(%arg0: i32, %arg1: i32) -> (i32, i32) {
    %c0_i32 = arith.constant 0 : i32
    %c0_i32_0 = arith.constant 0 : i32
    %c0_i32_1 = arith.constant 0 : i32
    return %c0_i32, %c0_i32_0 : i32, i32
  }
  func.func @transform_3(%arg0: i32, %arg1: i32) -> (i32, i32) {
    %c0_i32 = arith.constant 0 : i32
    %c0_i32_0 = arith.constant 0 : i32
    %c0_i32_1 = arith.constant 0 : i32
    return %c0_i32, %c0_i32_0 : i32, i32
  }
  func.func @transform_4(%arg0: i32, %arg1: i32) -> (i32, i32, i32) {
    %0 = arith.muli %arg1, %arg0 : i32
    %c0_i32 = arith.constant 0 : i32
    %c0_i32_0 = arith.constant 0 : i32
    %c0_i32_1 = arith.constant 0 : i32
    return %0, %c0_i32, %c0_i32_0 : i32, i32, i32
  }
}

</mosaic_0001>

<llo_original>
// kernel: tpu_custom_call.1
$region0: #{tpu_custom_call.1}
  #allocation0 [shape = 'u32[]', space=smem, size = 0x4, offset = 0x4, fixed_abs, tag = 'smem constant byte address 0x4 - core index']
  #allocation1 [shape = 'u32[144,128]{1,0:T(1,128)}', space=vmem, size = 0x12000, scoped, tag = 'internal scratch']
  #allocation2 [shape = 'f32[2,256,128]{2,1,0:T(8,128)}', space=vmem, size = 0x40000, scoped, tag = 'scratch operand']
  #allocation3 [shape = 'f32[1,128]{1,0:T(1,128)}', space=vmem, size = 0x200, scoped, tag = 'scratch operand']
  #allocation4 [shape = 'f32[1,128]{1,0:T(1,128)}', space=vmem, size = 0x200, scoped, tag = 'scratch operand']
  %s0 = inlined_call_operand.vmem [shape: bf16[2,18,18,4], index: 0, kind: input, shape index: {}]
  %s1 = inlined_call_operand.vmem [shape: bf16[36,128], index: 1, kind: input, shape index: {}]
  %s2 = inlined_call_operand.vmem [shape: f32[1,128], index: 2, kind: input, shape index: {}]
  %s3 = inlined_call_operand.vmem [shape: f32[1,128], index: 3, kind: input, shape index: {}]
  %s4 = inlined_call_operand.hbm [shape: f32[2,8,256], index: 4, kind: output, shape index: {}]
  %s5 = sld [smem:[#allocation0]]
  $region61: #{tpu_custom_call.1} parent=0
    _
  %s7 = ssub.s32 1, %s5
  %s8 = scalar_select 0, %s7, %s5
  $region1: #{tpu_custom_call.1} parent=0
    #allocation5 [shape = 'u8[16384]{0}', space=vmem, size = 0x4000, scoped, tag = 'output window, operand 0']
    #allocation6 [shape = 's32[2]{0}', space=sflag, size = 0x8, scoped, tag = 'scoped memory for tpu_custom_call.1']
    %9 = vsyncpa [#allocation6], 0
    %s10 = scalar_lea.sflag [#allocation6], 1
    %11 = vsyncpa %s10, 0
    loop: start=0, step=1, limit=6
    $region2: #{tpu_custom_call.1} parent=1 // loop_pre_header
      _
    $region3: #{tpu_custom_call.1} parent=1 // loop_header
      %s13 = sphi 0, %s17
      %p14 = scmp.ge.s32.totalorder %s13, 6
      %s20 = sphi 0, %s32
      %s21 = sphi 0, %s28
      %s22 = sphi 0, %s20
      %s23 = sphi 0, %s21
      %s24 = sphi 0, %s22
      %s25 = sphi 0, %s23
      %s39 = sphi 0, %s41
      %s42 = sphi 0, %s39
      %s43 = sphi 0, %s42
      %s59 = sphi 0, %s43
      %s63 = sphi 0, %s63
      %s65 = sphi 0, %s63
      %s66 = sphi 0, %s65
      %s80 = sphi 0, %s66
      %s84 = sphi 0, %s84
      %s86 = sphi 0, %s84
      %s87 = sphi 0, %s86
      %s101 = sphi 0, %s87
      %s105 = sphi 0, %s105
      %s107 = sphi 0, %s105
      %s108 = sphi 0, %s107
      %s122 = sphi 0, %s108
      %s130 = sphi 0, %s132
      %s133 = sphi 0, %s130
      %s134 = sphi 0, %s133
      %s150 = sphi 0, %s134
    $region4: #{tpu_custom_call.1} parent=1 // loop_header_branch
      %16 = sbr.rel (%p14) target = $region8
    $region5: #{tpu_custom_call.1} parent=1 // loop_body
      %s18 = ssub.s32 %s13, 1
      %s19 = ssub.s32 %s13, 2
      %s26 = sadd.s32 1, %s21
      %p27 = scmp.ge.s32.totalorder %s26, 2
      %s28 = scalar_select %p27, 0, %s26
      %s29 = sadd.s32 1, %s20
      %s30 = scalar_select %p27, %s29, %s20
      %p31 = scmp.ge.s32.totalorder %s30, 2
      %s32 = scalar_select %p31, 0, %s30
      %s33 = ssub.s32 1, %s20
      %s34 = smul.u32 %s21, %s33
      %s35 = ssub.s32 1, %s32
      %s36 = smul.u32 %s28, %s35
      %s37 = ssub.s32 %s34, %s36
      %p38 = scmp.eq.s32.totalorder %s37, 0
      %s40 = sadd.s32 %s39, 1
      %s41 = scalar_select %p38, %s39, %s40
      %p44 = pneg %p38
      %p45 = scmp.eq.s32.totalorder %s13, 3
      %p46 = por %p44, %p45
      %p47 = scmp.ne.s32.totalorder %s39, %s42
      %p48 = scmp.eq.s32.totalorder %s13, 0
      %p49 = por %p47, %p48
      %p50 = scmp.ne.s32.totalorder %s39, %s42
      %p51 = scmp.eq.s32.totalorder %s18, 3
      %p52 = por %p50, %p51
      %p53 = scmp.ne.s32.totalorder %s42, %s43
      %p54 = scmp.eq.s32.totalorder %s18, 0
      %p55 = por %p53, %p54
      %p56 = scmp.ne.s32.totalorder %s42, %s43
      %p57 = scmp.eq.s32.totalorder %s19, 3
      %p58 = por %p56, %p57
      %p60 = scmp.ne.s32.totalorder %s43, %s59
      %p61 = scmp.eq.s32.totalorder %s19, 0
      %p62 = por %p60, %p61
      %s64 = sadd.s32 %s63, 1
      %p67 = scmp.eq.s32.totalorder %s13, 3
      %p68 = scmp.ne.s32.totalorder %s63, %s65
      %p69 = scmp.eq.s32.totalorder %s13, 0
      %p70 = por %p68, %p69
      %p71 = scmp.ne.s32.totalorder %s63, %s65
      %p72 = scmp.eq.s32.totalorder %s18, 3
      %p73 = por %p71, %p72
      %p74 = scmp.ne.s32.totalorder %s65, %s66
      %p75 = scmp.eq.s32.totalorder %s18, 0
      %p76 = por %p74, %p75
      %p77 = scmp.ne.s32.totalorder %s65, %s66
      %p78 = scmp.eq.s32.totalorder %s19, 3
      %p79 = por %p77, %p78
      %p81 = scmp.ne.s32.totalorder %s66, %s80
      %p82 = scmp.eq.s32.totalorder %s19, 0
      %p83 = por %p81, %p82
      %s85 = sadd.s32 %s84, 1
      %p88 = scmp.eq.s32.totalorder %s13, 3
      %p89 = scmp.ne.s32.totalorder %s84, %s86
      %p90 = scmp.eq.s32.totalorder %s13, 0
      %p91 = por %p89, %p90
      %p92 = scmp.ne.s32.totalorder %s84, %s86
      %p93 = scmp.eq.s32.totalorder %s18, 3
      %p94 = por %p92, %p93
      %p95 = scmp.ne.s32.totalorder %s86, %s87
      %p96 = scmp.eq.s32.totalorder %s18, 0
      %p97 = por %p95, %p96
      %p98 = scmp.ne.s32.totalorder %s86, %s87
      %p99 = scmp.eq.s32.totalorder %s19, 3
      %p100 = por %p98, %p99
      %p102 = scmp.ne.s32.totalorder %s87, %s101
      %p103 = scmp.eq.s32.totalorder %s19, 0
      %p104 = por %p102, %p103
      %s106 = sadd.s32 %s105, 1
      %p109 = scmp.eq.s32.totalorder %s13, 3
      %p110 = scmp.ne.s32.totalorder %s105, %s107
      %p111 = scmp.eq.s32.totalorder %s13, 0
      %p112 = por %p110, %p111
      %p113 = scmp.ne.s32.totalorder %s105, %s107
      %p114 = scmp.eq.s32.totalorder %s18, 3
      %p115 = por %p113, %p114
      %p116 = scmp.ne.s32.totalorder %s107, %s108
      %p117 = scmp.eq.s32.totalorder %s18, 0
      %p118 = por %p116, %p117
      %p119 = scmp.ne.s32.totalorder %s107, %s108
      %p120 = scmp.eq.s32.totalorder %s19, 3
      %p121 = por %p119, %p120
      %p123 = scmp.ne.s32.totalorder %s108, %s122
      %p124 = scmp.eq.s32.totalorder %s19, 0
      %p125 = por %p123, %p124
      %s126 = smul.u32 %s21, %s20
      %s127 = smul.u32 %s28, %s32
      %s128 = ssub.s32 %s126, %s127
      %p129 = scmp.eq.s32.totalorder %s128, 0
      %s131 = sadd.s32 %s130, 1
      %s132 = scalar_select %p129, %s130, %s131
      %p135 = pneg %p129
      %p136 = scmp.eq.s32.totalorder %s13, 3
      %p137 = por %p135, %p136
      %p138 = scmp.ne.s32.totalorder %s130, %s133
      %p139 = scmp.eq.s32.totalorder %s13, 0
      %p140 = por %p138, %p139
      %p141 = scmp.ne.s32.totalorder %s130, %s133
      %p142 = scmp.eq.s32.totalorder %s18, 3
      %p143 = por %p141, %p142
      %p144 = scmp.ne.s32.totalorder %s133, %s134
      %p145 = scmp.eq.s32.totalorder %s18, 0
      %p146 = por %p144, %p145
      %p147 = scmp.ne.s32.totalorder %s133, %s134
      %p148 = scmp.eq.s32.totalorder %s19, 3
      %p149 = por %p147, %p148
      %p151 = scmp.ne.s32.totalorder %s134, %s150
      %p152 = scmp.eq.s32.totalorder %s19, 0
      %p153 = por %p151, %p152
      %p154 = scmp.le.s32.totalorder 1, %s13
      %p155 = scmp.lt.s32.totalorder %s13, 5
      %p156 = pnand %p154, %p155
      %p157 = pneg %p156
      // Predicated region
      $region9: #{tpu_custom_call.1} parent=5 // pred_check
        _
      $region10: #{tpu_custom_call.1} parent=5 // pred_check_branch
        %159 = sbr.rel (%p156) target = $region12
      $region11: #{tpu_custom_call.1} parent=5 // pred_region
        %s160 = ssub.s32 %s13, 1
        // Predicated region
        $region13: #{tpu_custom_call.1} parent=11 // pred_check
          %p161 = pneg %p76
        $region14: #{tpu_custom_call.1} parent=11 // pred_check_branch
          %163 = sbr.rel (%p161) target = $region16
        $region15: #{tpu_custom_call.1} parent=11 // pred_region
          _
        $region16: #{tpu_custom_call.1} parent=11 // pred_fallthru
          _
        // Predicated region
        $region17: #{tpu_custom_call.1} parent=11 // pred_check
          %p164 = pneg %p97
        $region18: #{tpu_custom_call.1} parent=11 // pred_check_branch
          %166 = sbr.rel (%p164) target = $region20
        $region19: #{tpu_custom_call.1} parent=11 // pred_region
          _
        $region20: #{tpu_custom_call.1} parent=11 // pred_fallthru
          _
        // Predicated region
        $region21: #{tpu_custom_call.1} parent=11 // pred_check
          %p167 = pneg %p118
        $region22: #{tpu_custom_call.1} parent=11 // pred_check_branch
          %169 = sbr.rel (%p167) target = $region24
        $region23: #{tpu_custom_call.1} parent=11 // pred_region
          _
        $region24: #{tpu_custom_call.1} parent=11 // pred_fallthru
          _
      $region12: #{tpu_custom_call.1} parent=5 // pred_fallthru
        _
      %p170 = scmp.lt.s32.totalorder %s13, 4
      // Predicated region
      $region25: #{tpu_custom_call.1} parent=5 // pred_check
        %p171 = pneg %p170
      $region26: #{tpu_custom_call.1} parent=5 // pred_check_branch
        %173 = sbr.rel (%p171) target = $region28
      $region27: #{tpu_custom_call.1} parent=5 // pred_region
        // Predicated region
        $region29: #{tpu_custom_call.1} parent=27 // pred_check
          %p174 = pneg %p49
        $region30: #{tpu_custom_call.1} parent=27 // pred_check_branch
          %176 = sbr.rel (%p174) target = $region32
        $region31: #{tpu_custom_call.1} parent=27 // pred_region
          %s177 = ssub.s32 1, %s20
          %s178 = smul.u32 %s21, %s177
          %p179 = scmp.lt.s32.totalorder %s178, 1
          %s180 = scalar_select %p179, %s178, 1
          %s181 = smul.addr %s180, 54
          %s182 = smul.addr %s181, 4
          %s183 = scalar_lea.vmem %s0, %s182
          %s184 = ssub.s32 1, %s20
          %s185 = smul.u32 %s21, %s184
        $region32: #{tpu_custom_call.1} parent=27 // pred_fallthru
          _
      $region28: #{tpu_custom_call.1} parent=5 // pred_fallthru
        _
      %p186 = scmp.le.s32.totalorder 1, %s13
      %p187 = scmp.lt.s32.totalorder %s13, 5
      %p188 = pnand %p186, %p187
      %p189 = pneg %p188
      // Predicated region
      $region33: #{tpu_custom_call.1} parent=5 // pred_check
        _
      $region34: #{tpu_custom_call.1} parent=5 // pred_check_branch
        %191 = sbr.rel (%p188) target = $region36
      $region35: #{tpu_custom_call.1} parent=5 // pred_region
        %s192 = ssub.s32 %s13, 1
        %s193 = ssub.s32 1, %s22
        %s194 = smul.u32 %s23, %s193
        %p195 = scmp.lt.s32.totalorder %s194, 1
        %s196 = scalar_select %p195, %s194, 1
        %s197 = smul.addr %s196, 54
        %s198 = smul.addr %s197, 4
        %s199 = scalar_lea.vmem %s0, %s198
        %p200 = pneg %p55
        %p201 = pneg %p52
        %p202 = pneg %p76
        %p203 = pneg %p73
        %p204 = pneg %p97
        %p205 = pneg %p94
        %p206 = pneg %p118
        %p207 = pneg %p115
        %p208 = pneg %p146
        %p209 = pneg %p143
        %s210 = sand.u32 %s133, 1
        %s211 = scalar_lea.sflag [#allocation6], %s210
        %s212 = sand.u32 %s133, 1
        %s213 = smul.addr %s212, 16
        %s214 = scalar_lea.vmem [#allocation5], %s213
        %s215 = ssub.s32 1, %s22
        %s216 = smul.u32 %s23, %s215
        %p217 = scmp.lt.s32.totalorder %s216, 1
        %s218 = scalar_select %p217, %s216, 1
        %s219 = smul.addr %s218, 54
        %s220 = smul.addr %s219, 4
        %s221 = scalar_lea.vmem %s0, %s220
        %s222 = ssub.s32 1, %s22
        %s223 = smul.u32 %s23, %s222
        %s224 = smul.u32 %s23, %s22
        %p226 = scmp.eq.s32.totalorder %s22, 0
        // Predicated region
        $region37: #{tpu_custom_call.1} parent=35 // pred_check
          %p227 = pneg %p226
        $region38: #{tpu_custom_call.1} parent=35 // pred_check_branch
          %229 = sbr.rel (%p227) target = $region40
        $region39: #{tpu_custom_call.1} parent=35 // pred_region
          %p230 = scmp.eq.s32.totalorder %s23, 0
          // Predicated region
          $region41: #{tpu_custom_call.1} parent=39 // pred_check
            %p231 = pneg %p230
          $region42: #{tpu_custom_call.1} parent=39 // pred_check_branch
            %233 = sbr.rel (%p231) target = $region44
          $region43: #{tpu_custom_call.1} parent=39 // pred_region
            %234 = vst [vmem:[#allocation3] sm:$0x1] 0.0
            %235 = vst [vmem:[#allocation4] sm:$0x1] 0.0
          $region44: #{tpu_custom_call.1} parent=39 // pred_fallthru
            _
          %v236 = vld [vmem:[%s221] sm:$0xf]
          %v237 = vld [vmem:[%s221 + $0x4] sm:$0xf]
          %v238 = vld [vmem:[%s221 + $0x8] sm:$0x1]
          %v239 = vld [vmem:[%s221 + $0xc] sm:$0xf]
          %v240 = vld [vmem:[%s221 + $0x10] sm:$0xf]
          %v241 = vld [vmem:[%s221 + $0x14] sm:$0x1]
          %v242 = vld [vmem:[%s221 + $0x18] sm:$0xf]
          %v243 = vld [vmem:[%s221 + $0x1c] sm:$0xf]
          %v244 = vld [vmem:[%s221 + $0x20] sm:$0x1]
          %v245 = vld [vmem:[%s221 + $0x24] sm:$0xf]
          %v246 = vld [vmem:[%s221 + $0x28] sm:$0xf]
          %v247 = vld [vmem:[%s221 + $0x2c] sm:$0x1]
          %v248 = vld [vmem:[%s221 + $0x30] sm:$0xf]
          %v249 = vld [vmem:[%s221 + $0x34] sm:$0xf]
          %v250 = vld [vmem:[%s221 + $0x38] sm:$0x1]
          %v251 = vld [vmem:[%s221 + $0x3c] sm:$0xf]
          %v252 = vld [vmem:[%s221 + $0x40] sm:$0xf]
          %v253 = vld [vmem:[%s221 + $0x44] sm:$0x1]
          %v254 = vld [vmem:[%s221 + $0x48] sm:$0xf]
          %v255 = vld [vmem:[%s221 + $0x4c] sm:$0xf]
          %v256 = vld [vmem:[%s221 + $0x50] sm:$0x1]
          %v257 = vld [vmem:[%s221 + $0x54] sm:$0xf]
          %v258 = vld [vmem:[%s221 + $0x58] sm:$0xf]
          %v259 = vld [vmem:[%s221 + $0x5c] sm:$0x1]
          %v260 = vld [vmem:[%s221 + $0x60] sm:$0xf]
          %v261 = vld [vmem:[%s221 + $0x64] sm:$0xf]
          %v262 = vld [vmem:[%s221 + $0x68] sm:$0x1]
          %v263 = vld [vmem:[%s221 + $0x6c] sm:$0xf]
          %v264 = vld [vmem:[%s221 + $0x70] sm:$0xf]
          %v265 = vld [vmem:[%s221 + $0x74] sm:$0x1]
          %v266 = vld [vmem:[%s221 + $0x78] sm:$0xf]
          %v267 = vld [vmem:[%s221 + $0x7c] sm:$0xf]
          %v268 = vld [vmem:[%s221 + $0x80] sm:$0x1]
          %v269 = vld [vmem:[%s221 + $0x84] sm:$0xf]
          %v270 = vld [vmem:[%s221 + $0x88] sm:$0xf]
          %v271 = vld [vmem:[%s221 + $0x8c] sm:$0x1]
          %v272 = vld [vmem:[%s221 + $0x90] sm:$0xf]
          %v273 = vld [vmem:[%s221 + $0x94] sm:$0xf]
          %v274 = vld [vmem:[%s221 + $0x98] sm:$0x1]
          %v275 = vld [vmem:[%s221 + $0x9c] sm:$0xf]
          %v276 = vld [vmem:[%s221 + $0xa0] sm:$0xf]
          %v277 = vld [vmem:[%s221 + $0xa4] sm:$0x1]
          %v278 = vld [vmem:[%s221 + $0xa8] sm:$0xf]
          %v279 = vld [vmem:[%s221 + $0xac] sm:$0xf]
          %v280 = vld [vmem:[%s221 + $0xb0] sm:$0x1]
          %v281 = vld [vmem:[%s221 + $0xb4] sm:$0xf]
          %v282 = vld [vmem:[%s221 + $0xb8] sm:$0xf]
          %v283 = vld [vmem:[%s221 + $0xbc] sm:$0x1]
          %v284 = vld [vmem:[%s221 + $0xc0] sm:$0xf]
          %v285 = vld [vmem:[%s221 + $0xc4] sm:$0xf]
          %v286 = vld [vmem:[%s221 + $0xc8] sm:$0x1]
          %v287 = vld [vmem:[%s221 + $0xcc] sm:$0xf]
          %v288 = vld [vmem:[%s221 + $0xd0] sm:$0xf]
          %v289 = vld [vmem:[%s221 + $0xd4] sm:$0x1]
          %vm290 = vsmask.f32 3328
          %vm291 = vsmask.f32 7440
          %vm292 = vmor %vm290, %vm291
          %v294 = vshrl.u32 %v236, 16
          %v296 = vrot.slane %v294, 4
          %v297 = vshll.u32 %v236, 16
          %v299 = vrot.slane %v297, 5
          %v300 = vor.u32 %v296, %v299
          %v301 = vrot.slane %v300, 4
          %v303 = vshll.u32 %v237, 16
          %v305 = vrot.slane %v303, 5
          %v306 = vsel %vm292, %v301, %v305
          %v307 = vshrl.u32 %v237, 16
          %v309 = vrot.slane %v307, 4
          %v310 = vor.u32 %v309, %v305
          %v311 = vrot.slane %v310, 4
          %v313 = vshll.u32 %v238, 16
          %v315 = vrot.slane %v313, 5
          %v316 = vsel %vm292, %v311, %v315
          %v318 = vshrl.u32 %v239, 16
          %v320 = vrot.slane %v318, 4
          %v321 = vshll.u32 %v239, 16
          %v323 = vrot.slane %v321, 5
          %v324 = vor.u32 %v320, %v323
          %v325 = vrot.slane %v324, 4
          %v327 = vshll.u32 %v240, 16
          %v329 = vrot.slane %v327, 5
          %v330 = vsel %vm292, %v325, %v329
          %v331 = vshrl.u32 %v240, 16
          %v333 = vrot.slane %v331, 4
          %v334 = vor.u32 %v333, %v329
          %v335 = vrot.slane %v334, 4
          %v337 = vshll.u32 %v241, 16
          %v339 = vrot.slane %v337, 5
          %v340 = vsel %vm292, %v335, %v339
          %v342 = vshrl.u32 %v242, 16
          %v344 = vrot.slane %v342, 4
          %v345 = vshll.u32 %v242, 16
          %v347 = vrot.slane %v345, 5
          %v348 = vor.u32 %v344, %v347
          %v349 = vrot.slane %v348, 4
          %v351 = vshll.u32 %v243, 16
          %v353 = vrot.slane %v351, 5
          %v354 = vsel %vm292, %v349, %v353
          %v355 = vshrl.u32 %v243, 16
          %v357 = vrot.slane %v355, 4
          %v358 = vor.u32 %v357, %v353
          %v359 = vrot.slane %v358, 4
          %v361 = vshll.u32 %v244, 16
          %v363 = vrot.slane %v361, 5
          %v364 = vsel %vm292, %v359, %v363
          %v366 = vshrl.u32 %v245, 16
          %v368 = vrot.slane %v366, 4
          %v369 = vshll.u32 %v245, 16
          %v371 = vrot.slane %v369, 5
          %v372 = vor.u32 %v368, %v371
          %v373 = vrot.slane %v372, 4
          %v375 = vshll.u32 %v246, 16
          %v377 = vrot.slane %v375, 5
          %v378 = vsel %vm292, %v373, %v377
          %v379 = vshrl.u32 %v246, 16
          %v381 = vrot.slane %v379, 4
          %v382 = vor.u32 %v381, %v377
          %v383 = vrot.slane %v382, 4
          %v385 = vshll.u32 %v247, 16
          %v387 = vrot.slane %v385, 5
          %v388 = vsel %vm292, %v383, %v387
          %v390 = vshrl.u32 %v248, 16
          %v392 = vrot.slane %v390, 4
          %v393 = vshll.u32 %v248, 16
          %v395 = vrot.slane %v393, 5
          %v396 = vor.u32 %v392, %v395
          %v397 = vrot.slane %v396, 4
          %v399 = vshll.u32 %v249, 16
          %v401 = vrot.slane %v399, 5
          %v402 = vsel %vm292, %v397, %v401
          %v403 = vshrl.u32 %v249, 16
          %v405 = vrot.slane %v403, 4
          %v406 = vor.u32 %v405, %v401
          %v407 = vrot.slane %v406, 4
          %v409 = vshll.u32 %v250, 16
          %v411 = vrot.slane %v409, 5
          %v412 = vsel %vm292, %v407, %v411
          %v414 = vshrl.u32 %v251, 16
          %v416 = vrot.slane %v414, 4
          %v417 = vshll.u32 %v251, 16
          %v419 = vrot.slane %v417, 5
          %v420 = vor.u32 %v416, %v419
          %v421 = vrot.slane %v420, 4
          %v423 = vshll.u32 %v252, 16
          %v425 = vrot.slane %v423, 5
          %v426 = vsel %vm292, %v421, %v425
          %v427 = vshrl.u32 %v252, 16
          %v429 = vrot.slane %v427, 4
          %v430 = vor.u32 %v429, %v425
          %v431 = vrot.slane %v430, 4
          %v433 = vshll.u32 %v253, 16
          %v435 = vrot.slane %v433, 5
          %v436 = vsel %vm292, %v431, %v435
          %v438 = vshrl.u32 %v254, 16
          %v440 = vrot.slane %v438, 4
          %v441 = vshll.u32 %v254, 16
          %v443 = vrot.slane %v441, 5
          %v444 = vor.u32 %v440, %v443
          %v445 = vrot.slane %v444, 4
          %v447 = vshll.u32 %v255, 16
          %v449 = vrot.slane %v447, 5
          %v450 = vsel %vm292, %v445, %v449
          %v451 = vshrl.u32 %v255, 16
          %v453 = vrot.slane %v451, 4
          %v454 = vor.u32 %v453, %v449
          %v455 = vrot.slane %v454, 4
          %v457 = vshll.u32 %v256, 16
          %v459 = vrot.slane %v457, 5
          %v460 = vsel %vm292, %v455, %v459
          %v462 = vshrl.u32 %v257, 16
          %v464 = vrot.slane %v462, 4
          %v465 = vshll.u32 %v257, 16
          %v467 = vrot.slane %v465, 5
          %v468 = vor.u32 %v464, %v467
          %v469 = vrot.slane %v468, 4
          %v471 = vshll.u32 %v258, 16
          %v473 = vrot.slane %v471, 5
          %v474 = vsel %vm292, %v469, %v473
          %v475 = vshrl.u32 %v258, 16
          %v477 = vrot.slane %v475, 4
          %v478 = vor.u32 %v477, %v473
          %v479 = vrot.slane %v478, 4
          %v481 = vshll.u32 %v259, 16
          %v483 = vrot.slane %v481, 5
          %v484 = vsel %vm292, %v479, %v483
          %v486 = vshrl.u32 %v260, 16
          %v488 = vrot.slane %v486, 4
          %v489 = vshll.u32 %v260, 16
          %v491 = vrot.slane %v489, 5
          %v492 = vor.u32 %v488, %v491
          %v493 = vrot.slane %v492, 4
          %v495 = vshll.u32 %v261, 16
          %v497 = vrot.slane %v495, 5
          %v498 = vsel %vm292, %v493, %v497
          %v499 = vshrl.u32 %v261, 16
          %v501 = vrot.slane %v499, 4
          %v502 = vor.u32 %v501, %v497
          %v503 = vrot.slane %v502, 4
          %v505 = vshll.u32 %v262, 16
          %v507 = vrot.slane %v505, 5
          %v508 = vsel %vm292, %v503, %v507
          %v510 = vshrl.u32 %v263, 16
          %v512 = vrot.slane %v510, 4
          %v513 = vshll.u32 %v263, 16
          %v515 = vrot.slane %v513, 5
          %v516 = vor.u32 %v512, %v515
          %v517 = vrot.slane %v516, 4
          %v519 = vshll.u32 %v264, 16
          %v521 = vrot.slane %v519, 5
          %v522 = vsel %vm292, %v517, %v521
          %v523 = vshrl.u32 %v264, 16
          %v525 = vrot.slane %v523, 4
          %v526 = vor.u32 %v525, %v521
          %v527 = vrot.slane %v526, 4
          %v529 = vshll.u32 %v265, 16
          %v531 = vrot.slane %v529, 5
          %v532 = vsel %vm292, %v527, %v531
          %v534 = vshrl.u32 %v266, 16
          %v536 = vrot.slane %v534, 4
          %v537 = vshll.u32 %v266, 16
          %v539 = vrot.slane %v537, 5
          %v540 = vor.u32 %v536, %v539
          %v541 = vrot.slane %v540, 4
          %v543 = vshll.u32 %v267, 16
          %v545 = vrot.slane %v543, 5
          %v546 = vsel %vm292, %v541, %v545
          %v547 = vshrl.u32 %v267, 16
          %v549 = vrot.slane %v547, 4
          %v550 = vor.u32 %v549, %v545
          %v551 = vrot.slane %v550, 4
          %v553 = vshll.u32 %v268, 16
          %v555 = vrot.slane %v553, 5
          %v556 = vsel %vm292, %v551, %v555
          %v558 = vshrl.u32 %v269, 16
          %v560 = vrot.slane %v558, 4
          %v561 = vshll.u32 %v269, 16
          %v563 = vrot.slane %v561, 5
          %v564 = vor.u32 %v560, %v563
          %v565 = vrot.slane %v564, 4
          %v567 = vshll.u32 %v270, 16
          %v569 = vrot.slane %v567, 5
          %v570 = vsel %vm292, %v565, %v569
          %v571 = vshrl.u32 %v270, 16
          %v573 = vrot.slane %v571, 4
          %v574 = vor.u32 %v573, %v569
          %v575 = vrot.slane %v574, 4
          %v577 = vshll.u32 %v271, 16
          %v579 = vrot.slane %v577, 5
          %v580 = vsel %vm292, %v575, %v579
          %v582 = vshrl.u32 %v272, 16
          %v584 = vrot.slane %v582, 4
          %v585 = vshll.u32 %v272, 16
          %v587 = vrot.slane %v585, 5
          %v588 = vor.u32 %v584, %v587
          %v589 = vrot.slane %v588, 4
          %v591 = vshll.u32 %v273, 16
          %v593 = vrot.slane %v591, 5
          %v594 = vsel %vm292, %v589, %v593
          %v595 = vshrl.u32 %v273, 16
          %v597 = vrot.slane %v595, 4
          %v598 = vor.u32 %v597, %v593
          %v599 = vrot.slane %v598, 4
          %v601 = vshll.u32 %v274, 16
          %v603 = vrot.slane %v601, 5
          %v604 = vsel %vm292, %v599, %v603
          %v606 = vshrl.u32 %v275, 16
          %v608 = vrot.slane %v606, 4
          %v609 = vshll.u32 %v275, 16
          %v611 = vrot.slane %v609, 5
          %v612 = vor.u32 %v608, %v611
          %v613 = vrot.slane %v612, 4
          %v615 = vshll.u32 %v276, 16
          %v617 = vrot.slane %v615, 5
          %v618 = vsel %vm292, %v613, %v617
          %v619 = vshrl.u32 %v276, 16
          %v621 = vrot.slane %v619, 4
          %v622 = vor.u32 %v621, %v617
          %v623 = vrot.slane %v622, 4
          %v625 = vshll.u32 %v277, 16
          %v627 = vrot.slane %v625, 5
          %v628 = vsel %vm292, %v623, %v627
          %v630 = vshrl.u32 %v278, 16
          %v632 = vrot.slane %v630, 4
          %v633 = vshll.u32 %v278, 16
          %v635 = vrot.slane %v633, 5
          %v636 = vor.u32 %v632, %v635
          %v637 = vrot.slane %v636, 4
          %v639 = vshll.u32 %v279, 16
          %v641 = vrot.slane %v639, 5
          %v642 = vsel %vm292, %v637, %v641
          %v643 = vshrl.u32 %v279, 16
          %v645 = vrot.slane %v643, 4
          %v646 = vor.u32 %v645, %v641
          %v647 = vrot.slane %v646, 4
          %v649 = vshll.u32 %v280, 16
          %v651 = vrot.slane %v649, 5
          %v652 = vsel %vm292, %v647, %v651
          %v654 = vshrl.u32 %v281, 16
          %v656 = vrot.slane %v654, 4
          %v657 = vshll.u32 %v281, 16
          %v659 = vrot.slane %v657, 5
          %v660 = vor.u32 %v656, %v659
          %v661 = vrot.slane %v660, 4
          %v663 = vshll.u32 %v282, 16
          %v665 = vrot.slane %v663, 5
          %v666 = vsel %vm292, %v661, %v665
          %v667 = vshrl.u32 %v282, 16
          %v669 = vrot.slane %v667, 4
          %v670 = vor.u32 %v669, %v665
          %v671 = vrot.slane %v670, 4
          %v673 = vshll.u32 %v283, 16
          %v675 = vrot.slane %v673, 5
          %v676 = vsel %vm292, %v671, %v675
          %vm725 = vcmask 1042432
          %vm726 = vcmask 1046532
          %vm727 = vmor %vm725, %vm726
          %v728 = vrot.slane %v236, 5
          %v729 = vrot.slane %v728, 4
          %v730 = vrot.slane %v237, 5
          %v731 = vsel %vm727, %v729, %v730
          %v732 = vrot.slane %v730, 4
          %v733 = vrot.slane %v238, 5
          %v734 = vsel %vm727, %v732, %v733
          %v735 = vrot.slane %v239, 5
          %v736 = vrot.slane %v735, 4
          %v737 = vrot.slane %v240, 5
          %v738 = vsel %vm727, %v736, %v737
          %v739 = vrot.slane %v737, 4
          %v740 = vrot.slane %v241, 5
          %v741 = vsel %vm727, %v739, %v740
          %v742 = vrot.slane %v242, 5
          %v743 = vrot.slane %v742, 4
          %v744 = vrot.slane %v243, 5
          %v745 = vsel %vm727, %v743, %v744
          %v746 = vrot.slane %v744, 4
          %v747 = vrot.slane %v244, 5
          %v748 = vsel %vm727, %v746, %v747
          %v749 = vrot.slane %v245, 5
          %v750 = vrot.slane %v749, 4
          %v751 = vrot.slane %v246, 5
          %v752 = vsel %vm727, %v750, %v751
          %v753 = vrot.slane %v751, 4
          %v754 = vrot.slane %v247, 5
          %v755 = vsel %vm727, %v753, %v754
          %v756 = vrot.slane %v248, 5
          %v757 = vrot.slane %v756, 4
          %v758 = vrot.slane %v249, 5
          %v759 = vsel %vm727, %v757, %v758
          %v760 = vrot.slane %v758, 4
          %v761 = vrot.slane %v250, 5
          %v762 = vsel %vm727, %v760, %v761
          %v763 = vrot.slane %v251, 5
          %v764 = vrot.slane %v763, 4
          %v765 = vrot.slane %v252, 5
          %v766 = vsel %vm727, %v764, %v765
          %v767 = vrot.slane %v765, 4
          %v768 = vrot.slane %v253, 5
          %v769 = vsel %vm727, %v767, %v768
          %v770 = vrot.slane %v254, 5
          %v771 = vrot.slane %v770, 4
          %v772 = vrot.slane %v255, 5
          %v773 = vsel %vm727, %v771, %v772
          %v774 = vrot.slane %v772, 4
          %v775 = vrot.slane %v256, 5
          %v776 = vsel %vm727, %v774, %v775
          %v777 = vrot.slane %v257, 5
          %v778 = vrot.slane %v777, 4
          %v779 = vrot.slane %v258, 5
          %v780 = vsel %vm727, %v778, %v779
          %v781 = vrot.slane %v779, 4
          %v782 = vrot.slane %v259, 5
          %v783 = vsel %vm727, %v781, %v782
          %v784 = vrot.slane %v260, 5
          %v785 = vrot.slane %v784, 4
          %v786 = vrot.slane %v261, 5
          %v787 = vsel %vm727, %v785, %v786
          %v788 = vrot.slane %v786, 4
          %v789 = vrot.slane %v262, 5
          %v790 = vsel %vm727, %v788, %v789
          %v791 = vrot.slane %v263, 5
          %v792 = vrot.slane %v791, 4
          %v793 = vrot.slane %v264, 5
          %v794 = vsel %vm727, %v792, %v793
          %v795 = vrot.slane %v793, 4
          %v796 = vrot.slane %v265, 5
          %v797 = vsel %vm727, %v795, %v796
          %v798 = vrot.slane %v266, 5
          %v799 = vrot.slane %v798, 4
          %v800 = vrot.slane %v267, 5
          %v801 = vsel %vm727, %v799, %v800
          %v802 = vrot.slane %v800, 4
          %v803 = vrot.slane %v268, 5
          %v804 = vsel %vm727, %v802, %v803
          %v805 = vrot.slane %v269, 5
          %v806 = vrot.slane %v805, 4
          %v807 = vrot.slane %v270, 5
          %v808 = vsel %vm727, %v806, %v807
          %v809 = vrot.slane %v807, 4
          %v810 = vrot.slane %v271, 5
          %v811 = vsel %vm727, %v809, %v810
          %v812 = vrot.slane %v272, 5
          %v813 = vrot.slane %v812, 4
          %v814 = vrot.slane %v273, 5
          %v815 = vsel %vm727, %v813, %v814
          %v816 = vrot.slane %v814, 4
          %v817 = vrot.slane %v274, 5
          %v818 = vsel %vm727, %v816, %v817
          %v819 = vrot.slane %v275, 5
          %v820 = vrot.slane %v819, 4
          %v821 = vrot.slane %v276, 5
          %v822 = vsel %vm727, %v820, %v821
          %v823 = vrot.slane %v821, 4
          %v824 = vrot.slane %v277, 5
          %v825 = vsel %vm727, %v823, %v824
          %v826 = vrot.slane %v278, 5
          %v827 = vrot.slane %v826, 4
          %v828 = vrot.slane %v279, 5
          %v829 = vsel %vm727, %v827, %v828
          %v830 = vrot.slane %v828, 4
          %v831 = vrot.slane %v280, 5
          %v832 = vsel %vm727, %v830, %v831
          %v833 = vrot.slane %v281, 5
          %v834 = vrot.slane %v833, 4
          %v835 = vrot.slane %v282, 5
          %v836 = vsel %vm727, %v834, %v835
          %v837 = vrot.slane %v835, 4
          %v838 = vrot.slane %v283, 5
          %v839 = vsel %vm727, %v837, %v838
          %v841 = vshrl.u32 %v284, 16
          %v843 = vrot.slane %v841, 4
          %v844 = vshll.u32 %v284, 16
          %v846 = vrot.slane %v844, 5
          %v847 = vor.u32 %v843, %v846
          %v848 = vrot.slane %v847, 4
          %v850 = vshll.u32 %v285, 16
          %v852 = vrot.slane %v850, 5
          %v853 = vsel %vm292, %v848, %v852
          %v854 = vshrl.u32 %v285, 16
          %v856 = vrot.slane %v854, 4
          %v857 = vor.u32 %v856, %v852
          %v858 = vrot.slane %v857, 4
          %v860 = vshll.u32 %v286, 16
          %v862 = vrot.slane %v860, 5
          %v863 = vsel %vm292, %v858, %v862
          %v867 = vrot.slane %v284, 5
          %v868 = vrot.slane %v867, 4
          %v869 = vrot.slane %v285, 5
          %v870 = vsel %vm727, %v868, %v869
          %v871 = vrot.slane %v869, 4
          %v872 = vrot.slane %v286, 5
          %v873 = vsel %vm727, %v871, %v872
          %v875 = vshrl.u32 %v287, 16
          %v877 = vrot.slane %v875, 4
          %v878 = vshll.u32 %v287, 16
          %v880 = vrot.slane %v878, 5
          %v881 = vor.u32 %v877, %v880
          %v882 = vrot.slane %v881, 4
          %v884 = vshll.u32 %v288, 16
          %v886 = vrot.slane %v884, 5
          %v887 = vsel %vm292, %v882, %v886
          %v888 = vshrl.u32 %v288, 16
          %v890 = vrot.slane %v888, 4
          %v891 = vor.u32 %v890, %v886
          %v892 = vrot.slane %v891, 4
          %v894 = vshll.u32 %v289, 16
          %v896 = vrot.slane %v894, 5
          %v897 = vsel %vm292, %v892, %v896
          %v901 = vrot.slane %v287, 5
          %v902 = vrot.slane %v901, 4
          %v903 = vrot.slane %v288, 5
          %v904 = vsel %vm727, %v902, %v903
          %v905 = vrot.slane %v903, 4
          %v906 = vrot.slane %v289, 5
          %v907 = vsel %vm727, %v905, %v906
          %v908 = vunpack.c.l.b16 %v236
          %v909 = vunpack.c.l.b16 %v237
          %v910 = vunpack.c.l.b16 %v239
          %v911 = vunpack.c.l.b16 %v240
          %v912 = vunpack.c.l.b16 %v242
          %v913 = vunpack.c.l.b16 %v243
          %v914 = vunpack.c.l.b16 %v245
          %v915 = vunpack.c.l.b16 %v246
          %v916 = vunpack.c.l.b16 %v248
          %v917 = vunpack.c.l.b16 %v249
          %v918 = vunpack.c.l.b16 %v251
          %v919 = vunpack.c.l.b16 %v252
          %v920 = vunpack.c.l.b16 %v254
          %v921 = vunpack.c.l.b16 %v255
          %v922 = vunpack.c.l.b16 %v257
          %v923 = vunpack.c.l.b16 %v258
          %v924 = vunpack.c.l.b16 %v260
          %v925 = vunpack.c.l.b16 %v261
          %v926 = vunpack.c.l.b16 %v263
          %v927 = vunpack.c.l.b16 %v264
          %v928 = vunpack.c.l.b16 %v266
          %v929 = vunpack.c.l.b16 %v267
          %v930 = vunpack.c.l.b16 %v269
          %v931 = vunpack.c.l.b16 %v270
          %v932 = vunpack.c.l.b16 %v272
          %v933 = vunpack.c.l.b16 %v273
          %v934 = vunpack.c.l.b16 %v275
          %v935 = vunpack.c.l.b16 %v276
          %v936 = vunpack.c.l.b16 %v278
          %v937 = vunpack.c.l.b16 %v279
          %v938 = vunpack.c.l.b16 %v281
          %v939 = vunpack.c.l.b16 %v282
          %v940 = vpack.c.b16 %v909, %v908
          %v941 = vpack.c.b16 %v911, %v910
          %v942 = vpack.c.b16 %v913, %v912
          %v943 = vpack.c.b16 %v915, %v914
          %v944 = vpack.c.b16 %v917, %v916
          %v945 = vpack.c.b16 %v919, %v918
          %v946 = vpack.c.b16 %v921, %v920
          %v947 = vpack.c.b16 %v923, %v922
          %v948 = vpack.c.b16 %v925, %v924
          %v949 = vpack.c.b16 %v927, %v926
          %v950 = vpack.c.b16 %v929, %v928
          %v951 = vpack.c.b16 %v931, %v930
          %v952 = vpack.c.b16 %v933, %v932
          %v953 = vpack.c.b16 %v935, %v934
          %v954 = vpack.c.b16 %v937, %v936
          %v955 = vpack.c.b16 %v939, %v938
          %v956 = vunpack.c.l.b16 %v306
          %v957 = vunpack.c.l.b16 %v316
          %v958 = vunpack.c.l.b16 %v330
          %v959 = vunpack.c.l.b16 %v340
          %v960 = vunpack.c.l.b16 %v354
          %v961 = vunpack.c.l.b16 %v364
          %v962 = vunpack.c.l.b16 %v378
          %v963 = vunpack.c.l.b16 %v388
          %v964 = vunpack.c.l.b16 %v402
          %v965 = vunpack.c.l.b16 %v412
          %v966 = vunpack.c.l.b16 %v426
          %v967 = vunpack.c.l.b16 %v436
          %v968 = vunpack.c.l.b16 %v450
          %v969 = vunpack.c.l.b16 %v460
          %v970 = vunpack.c.l.b16 %v474
          %v971 = vunpack.c.l.b16 %v484
          %v972 = vunpack.c.l.b16 %v498
          %v973 = vunpack.c.l.b16 %v508
          %v974 = vunpack.c.l.b16 %v522
          %v975 = vunpack.c.l.b16 %v532
          %v976 = vunpack.c.l.b16 %v546
          %v977 = vunpack.c.l.b16 %v556
          %v978 = vunpack.c.l.b16 %v570
          %v979 = vunpack.c.l.b16 %v580
          %v980 = vunpack.c.l.b16 %v594
          %v981 = vunpack.c.l.b16 %v604
          %v982 = vunpack.c.l.b16 %v618
          %v983 = vunpack.c.l.b16 %v628
          %v984 = vunpack.c.l.b16 %v642
          %v985 = vunpack.c.l.b16 %v652
          %v986 = vunpack.c.l.b16 %v666
          %v987 = vunpack.c.l.b16 %v676
          %v988 = vpack.c.b16 %v957, %v956
          %v989 = vpack.c.b16 %v959, %v958
          %v990 = vpack.c.b16 %v961, %v960
          %v991 = vpack.c.b16 %v963, %v962
          %v992 = vpack.c.b16 %v965, %v964
          %v993 = vpack.c.b16 %v967, %v966
          %v994 = vpack.c.b16 %v969, %v968
          %v995 = vpack.c.b16 %v971, %v970
          %v996 = vpack.c.b16 %v973, %v972
          %v997 = vpack.c.b16 %v975, %v974
          %v998 = vpack.c.b16 %v977, %v976
          %v999 = vpack.c.b16 %v979, %v978
          %v1000 = vpack.c.b16 %v981, %v980
          %v1001 = vpack.c.b16 %v983, %v982
          %v1002 = vpack.c.b16 %v985, %v984
          %v1003 = vpack.c.b16 %v987, %v986
          %1004 = vrot.lane.b32.xlu0 %v988, 4
          %v1005 = vpop.permute.xlu0 %1004
          %1006 = vrot.lane.b32.xlu0 %v989, 4
          %v1007 = vpop.permute.xlu0 %1006
          %1008 = vrot.lane.b32.xlu0 %v990, 4
          %v1009 = vpop.permute.xlu0 %1008
          %1010 = vrot.lane.b32.xlu0 %v991, 4
          %v1011 = vpop.permute.xlu0 %1010
          %1012 = vrot.lane.b32.xlu0 %v992, 4
          %v1013 = vpop.permute.xlu0 %1012
          %1014 = vrot.lane.b32.xlu0 %v993, 4
          %v1015 = vpop.permute.xlu0 %1014
          %1016 = vrot.lane.b32.xlu0 %v994, 4
          %v1017 = vpop.permute.xlu0 %1016
          %1018 = vrot.lane.b32.xlu0 %v995, 4
          %v1019 = vpop.permute.xlu0 %1018
          %1020 = vrot.lane.b32.xlu0 %v996, 4
          %v1021 = vpop.permute.xlu0 %1020
          %1022 = vrot.lane.b32.xlu0 %v997, 4
          %v1023 = vpop.permute.xlu0 %1022
          %1024 = vrot.lane.b32.xlu0 %v998, 4
          %v1025 = vpop.permute.xlu0 %1024
          %1026 = vrot.lane.b32.xlu0 %v999, 4
          %v1027 = vpop.permute.xlu0 %1026
          %1028 = vrot.lane.b32.xlu0 %v1000, 4
          %v1029 = vpop.permute.xlu0 %1028
          %1030 = vrot.lane.b32.xlu0 %v1001, 4
          %v1031 = vpop.permute.xlu0 %1030
          %1032 = vrot.lane.b32.xlu0 %v1002, 4
          %v1033 = vpop.permute.xlu0 %1032
          %1034 = vrot.lane.b32.xlu0 %v1003, 4
          %v1035 = vpop.permute.xlu0 %1034
          %v1036 = vunpack.c.l.b16 %v731
          %v1037 = vunpack.c.l.b16 %v734
          %v1038 = vunpack.c.l.b16 %v738
          %v1039 = vunpack.c.l.b16 %v741
          %v1040 = vunpack.c.l.b16 %v745
          %v1041 = vunpack.c.l.b16 %v748
          %v1042 = vunpack.c.l.b16 %v752
          %v1043 = vunpack.c.l.b16 %v755
          %v1044 = vunpack.c.l.b16 %v759
          %v1045 = vunpack.c.l.b16 %v762
          %v1046 = vunpack.c.l.b16 %v766
          %v1047 = vunpack.c.l.b16 %v769
          %v1048 = vunpack.c.l.b16 %v773
          %v1049 = vunpack.c.l.b16 %v776
          %v1050 = vunpack.c.l.b16 %v780
          %v1051 = vunpack.c.l.b16 %v783
          %v1052 = vunpack.c.l.b16 %v787
          %v1053 = vunpack.c.l.b16 %v790
          %v1054 = vunpack.c.l.b16 %v794
          %v1055 = vunpack.c.l.b16 %v797
          %v1056 = vunpack.c.l.b16 %v801
          %v1057 = vunpack.c.l.b16 %v804
          %v1058 = vunpack.c.l.b16 %v808
          %v1059 = vunpack.c.l.b16 %v811
          %v1060 = vunpack.c.l.b16 %v815
          %v1061 = vunpack.c.l.b16 %v818
          %v1062 = vunpack.c.l.b16 %v822
          %v1063 = vunpack.c.l.b16 %v825
          %v1064 = vunpack.c.l.b16 %v829
          %v1065 = vunpack.c.l.b16 %v832
          %v1066 = vunpack.c.l.b16 %v836
          %v1067 = vunpack.c.l.b16 %v839
          %v1068 = vpack.c.b16 %v1037, %v1036
          %v1069 = vpack.c.b16 %v1039, %v1038
          %v1070 = vpack.c.b16 %v1041, %v1040
          %v1071 = vpack.c.b16 %v1043, %v1042
          %v1072 = vpack.c.b16 %v1045, %v1044
          %v1073 = vpack.c.b16 %v1047, %v1046
          %v1074 = vpack.c.b16 %v1049, %v1048
          %v1075 = vpack.c.b16 %v1051, %v1050
          %v1076 = vpack.c.b16 %v1053, %v1052
          %v1077 = vpack.c.b16 %v1055, %v1054
          %v1078 = vpack.c.b16 %v1057, %v1056
          %v1079 = vpack.c.b16 %v1059, %v1058
          %v1080 = vpack.c.b16 %v1061, %v1060
          %v1081 = vpack.c.b16 %v1063, %v1062
          %v1082 = vpack.c.b16 %v1065, %v1064
          %v1083 = vpack.c.b16 %v1067, %v1066
          %1084 = vrot.lane.b32.xlu0 %v1068, 8
          %v1085 = vpop.permute.xlu0 %1084
          %1086 = vrot.lane.b32.xlu0 %v1069, 8
          %v1087 = vpop.permute.xlu0 %1086
          %1088 = vrot.lane.b32.xlu0 %v1070, 8
          %v1089 = vpop.permute.xlu0 %1088
          %1090 = vrot.lane.b32.xlu0 %v1071, 8
          %v1091 = vpop.permute.xlu0 %1090
          %1092 = vrot.lane.b32.xlu0 %v1072, 8
          %v1093 = vpop.permute.xlu0 %1092
          %1094 = vrot.lane.b32.xlu0 %v1073, 8
          %v1095 = vpop.permute.xlu0 %1094
          %1096 = vrot.lane.b32.xlu0 %v1074, 8
          %v1097 = vpop.permute.xlu0 %1096
          %1098 = vrot.lane.b32.xlu0 %v1075, 8
          %v1099 = vpop.permute.xlu0 %1098
          %1100 = vrot.lane.b32.xlu0 %v1076, 8
          %v1101 = vpop.permute.xlu0 %1100
          %1102 = vrot.lane.b32.xlu0 %v1077, 8
          %v1103 = vpop.permute.xlu0 %1102
          %1104 = vrot.lane.b32.xlu0 %v1078, 8
          %v1105 = vpop.permute.xlu0 %1104
          %1106 = vrot.lane.b32.xlu0 %v1079, 8
          %v1107 = vpop.permute.xlu0 %1106
          %1108 = vrot.lane.b32.xlu0 %v1080, 8
          %v1109 = vpop.permute.xlu0 %1108
          %1110 = vrot.lane.b32.xlu0 %v1081, 8
          %v1111 = vpop.permute.xlu0 %1110
          %1112 = vrot.lane.b32.xlu0 %v1082, 8
          %v1113 = vpop.permute.xlu0 %1112
          %1114 = vrot.lane.b32.xlu0 %v1083, 8
          %v1115 = vpop.permute.xlu0 %1114
          %v1116 = vunpack.c.l.b16 %v284
          %v1117 = vunpack.c.l.b16 %v285
          %v1118 = vpack.c.b16 %v1117, %v1116
          %1119 = vrot.lane.b32.xlu0 %v941, 12
          %v1120 = vpop.permute.xlu0 %1119
          %1121 = vrot.lane.b32.xlu0 %v942, 12
          %v1122 = vpop.permute.xlu0 %1121
          %1123 = vrot.lane.b32.xlu0 %v943, 12
          %v1124 = vpop.permute.xlu0 %1123
          %1125 = vrot.lane.b32.xlu0 %v944, 12
          %v1126 = vpop.permute.xlu0 %1125
          %1127 = vrot.lane.b32.xlu0 %v945, 12
          %v1128 = vpop.permute.xlu0 %1127
          %1129 = vrot.lane.b32.xlu0 %v946, 12
          %v1130 = vpop.permute.xlu0 %1129
          %1131 = vrot.lane.b32.xlu0 %v947, 12
          %v1132 = vpop.permute.xlu0 %1131
          %1133 = vrot.lane.b32.xlu0 %v948, 12
          %v1134 = vpop.permute.xlu0 %1133
          %1135 = vrot.lane.b32.xlu0 %v949, 12
          %v1136 = vpop.permute.xlu0 %1135
          %1137 = vrot.lane.b32.xlu0 %v950, 12
          %v1138 = vpop.permute.xlu0 %1137
          %1139 = vrot.lane.b32.xlu0 %v951, 12
          %v1140 = vpop.permute.xlu0 %1139
          %1141 = vrot.lane.b32.xlu0 %v952, 12
          %v1142 = vpop.permute.xlu0 %1141
          %1143 = vrot.lane.b32.xlu0 %v953, 12
          %v1144 = vpop.permute.xlu0 %1143
          %1145 = vrot.lane.b32.xlu0 %v954, 12
          %v1146 = vpop.permute.xlu0 %1145
          %1147 = vrot.lane.b32.xlu0 %v955, 12
          %v1148 = vpop.permute.xlu0 %1147
          %1149 = vrot.lane.b32.xlu0 %v1118, 12
          %v1150 = vpop.permute.xlu0 %1149
          %v1151 = vunpack.c.l.b16 %v853
          %v1152 = vunpack.c.l.b16 %v863
          %v1153 = vpack.c.b16 %v1152, %v1151
          %1154 = vrot.lane.b32.xlu0 %v989, 16
          %v1155 = vpop.permute.xlu0 %1154
          %1156 = vrot.lane.b32.xlu0 %v990, 16
          %v1157 = vpop.permute.xlu0 %1156
          %1158 = vrot.lane.b32.xlu0 %v991, 16
          %v1159 = vpop.permute.xlu0 %1158
          %1160 = vrot.lane.b32.xlu0 %v992, 16
          %v1161 = vpop.permute.xlu0 %1160
          %1162 = vrot.lane.b32.xlu0 %v993, 16
          %v1163 = vpop.permute.xlu0 %1162
          %1164 = vrot.lane.b32.xlu0 %v994, 16
          %v1165 = vpop.permute.xlu0 %1164
          %1166 = vrot.lane.b32.xlu0 %v995, 16
          %v1167 = vpop.permute.xlu0 %1166
          %1168 = vrot.lane.b32.xlu0 %v996, 16
          %v1169 = vpop.permute.xlu0 %1168
          %1170 = vrot.lane.b32.xlu0 %v997, 16
          %v1171 = vpop.permute.xlu0 %1170
          %1172 = vrot.lane.b32.xlu0 %v998, 16
          %v1173 = vpop.permute.xlu0 %1172
          %1174 = vrot.lane.b32.xlu0 %v999, 16
          %v1175 = vpop.permute.xlu0 %1174
          %1176 = vrot.lane.b32.xlu0 %v1000, 16
          %v1177 = vpop.permute.xlu0 %1176
          %1178 = vrot.lane.b32.xlu0 %v1001, 16
          %v1179 = vpop.permute.xlu0 %1178
          %1180 = vrot.lane.b32.xlu0 %v1002, 16
          %v1181 = vpop.permute.xlu0 %1180
          %1182 = vrot.lane.b32.xlu0 %v1003, 16
          %v1183 = vpop.permute.xlu0 %1182
          %1184 = vrot.lane.b32.xlu0 %v1153, 16
          %v1185 = vpop.permute.xlu0 %1184
          %v1186 = vunpack.c.l.b16 %v870
          %v1187 = vunpack.c.l.b16 %v873
          %v1188 = vpack.c.b16 %v1187, %v1186
          %1189 = vrot.lane.b32.xlu0 %v1069, 20
          %v1190 = vpop.permute.xlu0 %1189
          %1191 = vrot.lane.b32.xlu0 %v1070, 20
          %v1192 = vpop.permute.xlu0 %1191
          %1193 = vrot.lane.b32.xlu0 %v1071, 20
          %v1194 = vpop.permute.xlu0 %1193
          %1195 = vrot.lane.b32.xlu0 %v1072, 20
          %v1196 = vpop.permute.xlu0 %1195
          %1197 = vrot.lane.b32.xlu0 %v1073, 20
          %v1198 = vpop.permute.xlu0 %1197
          %1199 = vrot.lane.b32.xlu0 %v1074, 20
          %v1200 = vpop.permute.xlu0 %1199
          %1201 = vrot.lane.b32.xlu0 %v1075, 20
          %v1202 = vpop.permute.xlu0 %1201
          %1203 = vrot.lane.b32.xlu0 %v1076, 20
          %v1204 = vpop.permute.xlu0 %1203
          %1205 = vrot.lane.b32.xlu0 %v1077, 20
          %v1206 = vpop.permute.xlu0 %1205
          %1207 = vrot.lane.b32.xlu0 %v1078, 20
          %v1208 = vpop.permute.xlu0 %1207
          %1209 = vrot.lane.b32.xlu0 %v1079, 20
          %v1210 = vpop.permute.xlu0 %1209
          %1211 = vrot.lane.b32.xlu0 %v1080, 20
          %v1212 = vpop.permute.xlu0 %1211
          %1213 = vrot.lane.b32.xlu0 %v1081, 20
          %v1214 = vpop.permute.xlu0 %1213
          %1215 = vrot.lane.b32.xlu0 %v1082, 20
          %v1216 = vpop.permute.xlu0 %1215
          %1217 = vrot.lane.b32.xlu0 %v1083, 20
          %v1218 = vpop.permute.xlu0 %1217
          %1219 = vrot.lane.b32.xlu0 %v1188, 20
          %v1220 = vpop.permute.xlu0 %1219
          %v1221 = vunpack.c.l.b16 %v287
          %v1222 = vunpack.c.l.b16 %v288
          %v1223 = vpack.c.b16 %v1222, %v1221
          %1224 = vrot.lane.b32.xlu0 %v942, 24
          %v1225 = vpop.permute.xlu0 %1224
          %1226 = vrot.lane.b32.xlu0 %v943, 24
          %v1227 = vpop.permute.xlu0 %1226
          %1228 = vrot.lane.b32.xlu0 %v944, 24
          %v1229 = vpop.permute.xlu0 %1228
          %1230 = vrot.lane.b32.xlu0 %v945, 24
          %v1231 = vpop.permute.xlu0 %1230
          %1232 = vrot.lane.b32.xlu0 %v946, 24
          %v1233 = vpop.permute.xlu0 %1232
          %1234 = vrot.lane.b32.xlu0 %v947, 24
          %v1235 = vpop.permute.xlu0 %1234
          %1236 = vrot.lane.b32.xlu0 %v948, 24
          %v1237 = vpop.permute.xlu0 %1236
          %1238 = vrot.lane.b32.xlu0 %v949, 24
          %v1239 = vpop.permute.xlu0 %1238
          %1240 = vrot.lane.b32.xlu0 %v950, 24
          %v1241 = vpop.permute.xlu0 %1240
          %1242 = vrot.lane.b32.xlu0 %v951, 24
          %v1243 = vpop.permute.xlu0 %1242
          %1244 = vrot.lane.b32.xlu0 %v952, 24
          %v1245 = vpop.permute.xlu0 %1244
          %1246 = vrot.lane.b32.xlu0 %v953, 24
          %v1247 = vpop.permute.xlu0 %1246
          %1248 = vrot.lane.b32.xlu0 %v954, 24
          %v1249 = vpop.permute.xlu0 %1248
          %1250 = vrot.lane.b32.xlu0 %v955, 24
          %v1251 = vpop.permute.xlu0 %1250
          %1252 = vrot.lane.b32.xlu0 %v1118, 24
          %v1253 = vpop.permute.xlu0 %1252
          %1254 = vrot.lane.b32.xlu0 %v1223, 24
          %v1255 = vpop.permute.xlu0 %1254
          %v1256 = vunpack.c.l.b16 %v887
          %v1257 = vunpack.c.l.b16 %v897
          %v1258 = vpack.c.b16 %v1257, %v1256
          %1259 = vrot.lane.b32.xlu0 %v990, 28
          %v1260 = vpop.permute.xlu0 %1259
          %1261 = vrot.lane.b32.xlu0 %v991, 28
          %v1262 = vpop.permute.xlu0 %1261
          %1263 = vrot.lane.b32.xlu0 %v992, 28
          %v1264 = vpop.permute.xlu0 %1263
          %1265 = vrot.lane.b32.xlu0 %v993, 28
          %v1266 = vpop.permute.xlu0 %1265
          %1267 = vrot.lane.b32.xlu0 %v994, 28
          %v1268 = vpop.permute.xlu0 %1267
          %1269 = vrot.lane.b32.xlu0 %v995, 28
          %v1270 = vpop.permute.xlu0 %1269
          %1271 = vrot.lane.b32.xlu0 %v996, 28
          %v1272 = vpop.permute.xlu0 %1271
          %1273 = vrot.lane.b32.xlu0 %v997, 28
          %v1274 = vpop.permute.xlu0 %1273
          %1275 = vrot.lane.b32.xlu0 %v998, 28
          %v1276 = vpop.permute.xlu0 %1275
          %1277 = vrot.lane.b32.xlu0 %v999, 28
          %v1278 = vpop.permute.xlu0 %1277
          %1279 = vrot.lane.b32.xlu0 %v1000, 28
          %v1280 = vpop.permute.xlu0 %1279
          %1281 = vrot.lane.b32.xlu0 %v1001, 28
          %v1282 = vpop.permute.xlu0 %1281
          %1283 = vrot.lane.b32.xlu0 %v1002, 28
          %v1284 = vpop.permute.xlu0 %1283
          %1285 = vrot.lane.b32.xlu0 %v1003, 28
          %v1286 = vpop.permute.xlu0 %1285
          %1287 = vrot.lane.b32.xlu0 %v1153, 28
          %v1288 = vpop.permute.xlu0 %1287
          %1289 = vrot.lane.b32.xlu0 %v1258, 28
          %v1290 = vpop.permute.xlu0 %1289
          %v1291 = vunpack.c.l.b16 %v904
          %v1292 = vunpack.c.l.b16 %v907
          %v1293 = vpack.c.b16 %v1292, %v1291
          %1294 = vrot.lane.b32.xlu0 %v1070, 32
          %v1295 = vpop.permute.xlu0 %1294
          %1296 = vrot.lane.b32.xlu0 %v1071, 32
          %v1297 = vpop.permute.xlu0 %1296
          %1298 = vrot.lane.b32.xlu0 %v1072, 32
          %v1299 = vpop.permute.xlu0 %1298
          %1300 = vrot.lane.b32.xlu0 %v1073, 32
          %v1301 = vpop.permute.xlu0 %1300
          %1302 = vrot.lane.b32.xlu0 %v1074, 32
          %v1303 = vpop.permute.xlu0 %1302
          %1304 = vrot.lane.b32.xlu0 %v1075, 32
          %v1305 = vpop.permute.xlu0 %1304
          %1306 = vrot.lane.b32.xlu0 %v1076, 32
          %v1307 = vpop.permute.xlu0 %1306
          %1308 = vrot.lane.b32.xlu0 %v1077, 32
          %v1309 = vpop.permute.xlu0 %1308
          %1310 = vrot.lane.b32.xlu0 %v1078, 32
          %v1311 = vpop.permute.xlu0 %1310
          %1312 = vrot.lane.b32.xlu0 %v1079, 32
          %v1313 = vpop.permute.xlu0 %1312
          %1314 = vrot.lane.b32.xlu0 %v1080, 32
          %v1315 = vpop.permute.xlu0 %1314
          %1316 = vrot.lane.b32.xlu0 %v1081, 32
          %v1317 = vpop.permute.xlu0 %1316
          %1318 = vrot.lane.b32.xlu0 %v1082, 32
          %v1319 = vpop.permute.xlu0 %1318
          %1320 = vrot.lane.b32.xlu0 %v1083, 32
          %v1321 = vpop.permute.xlu0 %1320
          %1322 = vrot.lane.b32.xlu0 %v1188, 32
          %v1323 = vpop.permute.xlu0 %1322
          %1324 = vrot.lane.b32.xlu0 %v1293, 32
          %v1325 = vpop.permute.xlu0 %1324
          %vm1326 = vcmask 31744
          %v1329 = vsel %vm1326, %v940, %v1005
          %v1332 = vsel %vm1326, %v941, %v1007
          %v1335 = vsel %vm1326, %v942, %v1009
          %v1338 = vsel %vm1326, %v943, %v1011
          %v1341 = vsel %vm1326, %v944, %v1013
          %v1344 = vsel %vm1326, %v945, %v1015
          %v1347 = vsel %vm1326, %v946, %v1017
          %v1350 = vsel %vm1326, %v947, %v1019
          %v1353 = vsel %vm1326, %v948, %v1021
          %v1356 = vsel %vm1326, %v949, %v1023
          %v1359 = vsel %vm1326, %v950, %v1025
          %v1362 = vsel %vm1326, %v951, %v1027
          %v1365 = vsel %vm1326, %v952, %v1029
          %v1368 = vsel %vm1326, %v953, %v1031
          %v1371 = vsel %vm1326, %v954, %v1033
          %v1374 = vsel %vm1326, %v955, %v1035
          %vm1375 = vcmask 64512
          %v1377 = vsel %vm1375, %v1329, %v1085
          %v1379 = vsel %vm1375, %v1332, %v1087
          %v1381 = vsel %vm1375, %v1335, %v1089
          %v1383 = vsel %vm1375, %v1338, %v1091
          %v1385 = vsel %vm1375, %v1341, %v1093
          %v1387 = vsel %vm1375, %v1344, %v1095
          %v1389 = vsel %vm1375, %v1347, %v1097
          %v1391 = vsel %vm1375, %v1350, %v1099
          %v1393 = vsel %vm1375, %v1353, %v1101
          %v1395 = vsel %vm1375, %v1356, %v1103
          %v1397 = vsel %vm1375, %v1359, %v1105
          %v1399 = vsel %vm1375, %v1362, %v1107
          %v1401 = vsel %vm1375, %v1365, %v1109
          %v1403 = vsel %vm1375, %v1368, %v1111
          %v1405 = vsel %vm1375, %v1371, %v1113
          %v1407 = vsel %vm1375, %v1374, %v1115
          %vm1408 = vcmask 97280
          %v1410 = vsel %vm1408, %v1377, %v1120
          %v1412 = vsel %vm1408, %v1379, %v1122
          %v1414 = vsel %vm1408, %v1381, %v1124
          %v1416 = vsel %vm1408, %v1383, %v1126
          %v1418 = vsel %vm1408, %v1385, %v1128
          %v1420 = vsel %vm1408, %v1387, %v1130
          %v1422 = vsel %vm1408, %v1389, %v1132
          %v1424 = vsel %vm1408, %v1391, %v1134
          %v1426 = vsel %vm1408, %v1393, %v1136
          %v1428 = vsel %vm1408, %v1395, %v1138
          %v1430 = vsel %vm1408, %v1397, %v1140
          %v1432 = vsel %vm1408, %v1399, %v1142
          %v1434 = vsel %vm1408, %v1401, %v1144
          %v1436 = vsel %vm1408, %v1403, %v1146
          %v1438 = vsel %vm1408, %v1405, %v1148
          %v1440 = vsel %vm1408, %v1407, %v1150
          %vm1441 = vcmask 130048
          %v1443 = vsel %vm1441, %v1410, %v1155
          %v1445 = vsel %vm1441, %v1412, %v1157
          %v1447 = vsel %vm1441, %v1414, %v1159
          %v1449 = vsel %vm1441, %v1416, %v1161
          %v1451 = vsel %vm1441, %v1418, %v1163
          %v1453 = vsel %vm1441, %v1420, %v1165
          %v1455 = vsel %vm1441, %v1422, %v1167
          %v1457 = vsel %vm1441, %v1424, %v1169
          %v1459 = vsel %vm1441, %v1426, %v1171
          %v1461 = vsel %vm1441, %v1428, %v1173
          %v1463 = vsel %vm1441, %v1430, %v1175
          %v1465 = vsel %vm1441, %v1432, %v1177
          %v1467 = vsel %vm1441, %v1434, %v1179
          %v1469 = vsel %vm1441, %v1436, %v1181
          %v1471 = vsel %vm1441, %v1438, %v1183
          %v1473 = vsel %vm1441, %v1440, %v1185
          %vm1474 = vcmask 162816
          %v1476 = vsel %vm1474, %v1443, %v1190
          %v1478 = vsel %vm1474, %v1445, %v1192
          %v1480 = vsel %vm1474, %v1447, %v1194
          %v1482 = vsel %vm1474, %v1449, %v1196
          %v1484 = vsel %vm1474, %v1451, %v1198
          %v1486 = vsel %vm1474, %v1453, %v1200
          %v1488 = vsel %vm1474, %v1455, %v1202
          %v1490 = vsel %vm1474, %v1457, %v1204
          %v1492 = vsel %vm1474, %v1459, %v1206
          %v1494 = vsel %vm1474, %v1461, %v1208
          %v1496 = vsel %vm1474, %v1463, %v1210
          %v1498 = vsel %vm1474, %v1465, %v1212
          %v1500 = vsel %vm1474, %v1467, %v1214
          %v1502 = vsel %vm1474, %v1469, %v1216
          %v1504 = vsel %vm1474, %v1471, %v1218
          %v1506 = vsel %vm1474, %v1473, %v1220
          %vm1507 = vcmask 195584
          %v1509 = vsel %vm1507, %v1476, %v1225
          %v1511 = vsel %vm1507, %v1478, %v1227
          %v1513 = vsel %vm1507, %v1480, %v1229
          %v1515 = vsel %vm1507, %v1482, %v1231
          %v1517 = vsel %vm1507, %v1484, %v1233
          %v1519 = vsel %vm1507, %v1486, %v1235
          %v1521 = vsel %vm1507, %v1488, %v1237
          %v1523 = vsel %vm1507, %v1490, %v1239
          %v1525 = vsel %vm1507, %v1492, %v1241
          %v1527 = vsel %vm1507, %v1494, %v1243
          %v1529 = vsel %vm1507, %v1496, %v1245
          %v1531 = vsel %vm1507, %v1498, %v1247
          %v1533 = vsel %vm1507, %v1500, %v1249
          %v1535 = vsel %vm1507, %v1502, %v1251
          %v1537 = vsel %vm1507, %v1504, %v1253
          %v1539 = vsel %vm1507, %v1506, %v1255
          %vm1540 = vcmask 228352
          %v1542 = vsel %vm1540, %v1509, %v1260
          %v1544 = vsel %vm1540, %v1511, %v1262
          %v1546 = vsel %vm1540, %v1513, %v1264
          %v1548 = vsel %vm1540, %v1515, %v1266
          %v1550 = vsel %vm1540, %v1517, %v1268
          %v1552 = vsel %vm1540, %v1519, %v1270
          %v1554 = vsel %vm1540, %v1521, %v1272
          %v1556 = vsel %vm1540, %v1523, %v1274
          %v1558 = vsel %vm1540, %v1525, %v1276
          %v1560 = vsel %vm1540, %v1527, %v1278
          %v1562 = vsel %vm1540, %v1529, %v1280
          %v1564 = vsel %vm1540, %v1531, %v1282
          %v1566 = vsel %vm1540, %v1533, %v1284
          %v1568 = vsel %vm1540, %v1535, %v1286
          %v1570 = vsel %vm1540, %v1537, %v1288
          %v1572 = vsel %vm1540, %v1539, %v1290
          %vm1573 = vcmask 261120
          %v1575 = vsel %vm1573, %v1542, %v1295
          %v1577 = vsel %vm1573, %v1544, %v1297
          %v1579 = vsel %vm1573, %v1546, %v1299
          %v1581 = vsel %vm1573, %v1548, %v1301
          %v1583 = vsel %vm1573, %v1550, %v1303
          %v1585 = vsel %vm1573, %v1552, %v1305
          %v1587 = vsel %vm1573, %v1554, %v1307
          %v1589 = vsel %vm1573, %v1556, %v1309
          %v1591 = vsel %vm1573, %v1558, %v1311
          %v1593 = vsel %vm1573, %v1560, %v1313
          %v1595 = vsel %vm1573, %v1562, %v1315
          %v1597 = vsel %vm1573, %v1564, %v1317
          %v1599 = vsel %vm1573, %v1566, %v1319
          %v1601 = vsel %vm1573, %v1568, %v1321
          %v1603 = vsel %vm1573, %v1570, %v1323
          %v1605 = vsel %vm1573, %v1572, %v1325
          %v1606 = vld [vmem:[%s1] sm:$0xf]
          %v1607 = vld [vmem:[%s1 + $0x4] sm:$0xf]
          %v1608 = vld [vmem:[%s1 + $0x8] sm:$0xf]
          %v1609 = vld [vmem:[%s1 + $0xc] sm:$0xf]
          %v1610 = vld [vmem:[%s1 + $0x10] sm:$0x3]
          %v1616 = vunpack.c.l.b16 %v1606
          %v1617 = vunpack.c.l.b16 %v1607
          %v1618 = vunpack.c.l.b16 %v1608
          %v1619 = vunpack.c.l.b16 %v1609
          %v1620 = vunpack.c.l.b16 %v1610
          %v1621 = vpack.c.b16 %v1617, %v1616
          %v1622 = vpack.c.b16 %v1619, %v1618
          %v1623 = vpack.c.b16 %v1620, %v1620
          %vm1626 = vcmask 293888
          %v1627 = vsel %vm1626, %v1575, 0
          %v1629 = vsel %vm1626, %v1577, 0
          %v1631 = vsel %vm1626, %v1579, 0
          %v1633 = vsel %vm1626, %v1581, 0
          %v1635 = vsel %vm1626, %v1583, 0
          %v1637 = vsel %vm1626, %v1585, 0
          %v1639 = vsel %vm1626, %v1587, 0
          %v1641 = vsel %vm1626, %v1589, 0
          %v1643 = vsel %vm1626, %v1591, 0
          %v1645 = vsel %vm1626, %v1593, 0
          %v1647 = vsel %vm1626, %v1595, 0
          %v1649 = vsel %vm1626, %v1597, 0
          %v1651 = vsel %vm1626, %v1599, 0
          %v1653 = vsel %vm1626, %v1601, 0
          %v1655 = vsel %vm1626, %v1603, 0
          %v1657 = vsel %vm1626, %v1605, 0
          %vm1659 = vcmask 1041408
          %v1661 = vsel %vm1659, %v1623, 0
          %1663 = vmatprep.subr.bf16.mxu0 0
          %1664 = vmatpush1.bf16.msra.mxu0 0
          %1665 = vmatprep.subr.bf16.mxu0 0
          %1666 = vmatpush1.bf16.msra.mxu0 0
          %1667 = vmatprep.subr.bf16.mxu0 0
          %1668 = vmatpush1.bf16.msra.mxu0 0
          %1669 = vmatprep.subr.bf16.mxu0 0
          %1670 = vmatpush1.bf16.msra.mxu0 0
          %1671 = vmatprep.subr.bf16.mxu0 0
          %1672 = vmatpush1.bf16.msra.mxu0 0
          %1673 = vmatprep.subr.bf16.mxu0 0
          %1674 = vmatpush1.bf16.msra.mxu0 %v1661
          %1675 = vmatprep.subr.bf16.mxu0 0
          %1676 = vmatpush1.bf16.msra.mxu0 %v1622
          %1677 = vmatprep.subr.bf16.mxu0 0
          %1678 = vmatpush1.bf16.msra.mxu0 %v1621
          %1679 = vmatprep.subr.bf16.mxu0 0
          %1680 = vmatpush2.bf16.msra.mxu0 0
          %1681 = vmatprep.subr.bf16.mxu0 0
          %1682 = vmatpush2.bf16.msra.mxu0 0
          %1683 = vmatprep.subr.bf16.mxu0 0
          %1684 = vmatpush2.bf16.msra.mxu0 0
          %1685 = vmatprep.subr.bf16.mxu0 0
          %1686 = vmatpush2.bf16.msra.mxu0 0
          %1687 = vmatprep.subr.bf16.mxu0 0
          %1688 = vmatpush2.bf16.msra.mxu0 0
          %1689 = vmatprep.subr.bf16.mxu0 0
          %1690 = vmatpush2.bf16.msra.mxu0 0
          %1691 = vmatprep.subr.bf16.mxu0 0
          %1692 = vmatpush2.bf16.msra.mxu0 0
          %1693 = vmatprep.subr.bf16.mxu0 0
          %1694 = vmatpush2.bf16.msra.mxu0 0
          %1695 = vmatprep.mubr.bf16.mxu0 0
          %1696 = vmatmul.mubr.bf16.gmra.mxu0 %v1627
          %v1697 = vpop.f32.mrf.mxu0
          %v1698 = vadd.f32 0.0, %v1697
          %v1699 = vpop.f32.mrf.mxu0
          %v1700 = vpop.f32.mrf.mxu0
          %v1701 = vadd.f32 0.0, %v1700
          %v1702 = vpop.f32.mrf.mxu0
          %1703 = vmatprep.mubr.bf16.mxu0 0
          %1704 = vmatmul.mubr.bf16.gmra.mxu0 %v1629
          %v1705 = vpop.f32.mrf.mxu0
          %v1706 = vadd.f32 0.0, %v1705
          %v1707 = vpop.f32.mrf.mxu0
          %v1708 = vpop.f32.mrf.mxu0
          %v1709 = vadd.f32 0.0, %v1708
          %v1710 = vpop.f32.mrf.mxu0
          %1711 = vmatprep.mubr.bf16.mxu0 0
          %1712 = vmatmul.mubr.bf16.gmra.mxu0 %v1631
          %v1713 = vpop.f32.mrf.mxu0
          %v1714 = vadd.f32 0.0, %v1713
          %v1715 = vpop.f32.mrf.mxu0
          %v1716 = vpop.f32.mrf.mxu0
          %v1717 = vadd.f32 0.0, %v1716
          %v1718 = vpop.f32.mrf.mxu0
          %1719 = vmatprep.mubr.bf16.mxu0 0
          %1720 = vmatmul.mubr.bf16.gmra.mxu0 %v1633
          %v1721 = vpop.f32.mrf.mxu0
          %v1722 = vadd.f32 0.0, %v1721
          %v1723 = vpop.f32.mrf.mxu0
          %v1724 = vpop.f32.mrf.mxu0
          %v1725 = vadd.f32 0.0, %v1724
          %v1726 = vpop.f32.mrf.mxu0
          %1727 = vmatprep.mubr.bf16.mxu0 0
          %1728 = vmatmul.mubr.bf16.gmra.mxu0 %v1635
          %v1729 = vpop.f32.mrf.mxu0
          %v1730 = vadd.f32 0.0, %v1729
          %v1731 = vpop.f32.mrf.mxu0
          %v1732 = vpop.f32.mrf.mxu0
          %v1733 = vadd.f32 0.0, %v1732
          %v1734 = vpop.f32.mrf.mxu0
          %1735 = vmatprep.mubr.bf16.mxu0 0
          %1736 = vmatmul.mubr.bf16.gmra.mxu0 %v1637
          %v1737 = vpop.f32.mrf.mxu0
          %v1738 = vadd.f32 0.0, %v1737
          %v1739 = vpop.f32.mrf.mxu0
          %v1740 = vpop.f32.mrf.mxu0
          %v1741 = vadd.f32 0.0, %v1740
          %v1742 = vpop.f32.mrf.mxu0
          %1743 = vmatprep.mubr.bf16.mxu0 0
          %1744 = vmatmul.mubr.bf16.gmra.mxu0 %v1639
          %v1745 = vpop.f32.mrf.mxu0
          %v1746 = vadd.f32 0.0, %v1745
          %v1747 = vpop.f32.mrf.mxu0
          %v1748 = vpop.f32.mrf.mxu0
          %v1749 = vadd.f32 0.0, %v1748
          %v1750 = vpop.f32.mrf.mxu0
          %1751 = vmatprep.mubr.bf16.mxu0 0
          %1752 = vmatmul.mubr.bf16.gmra.mxu0 %v1641
          %v1753 = vpop.f32.mrf.mxu0
          %v1754 = vadd.f32 0.0, %v1753
          %v1755 = vpop.f32.mrf.mxu0
          %v1756 = vpop.f32.mrf.mxu0
          %v1757 = vadd.f32 0.0, %v1756
          %v1758 = vpop.f32.mrf.mxu0
          %1759 = vmatprep.mubr.bf16.mxu0 0
          %1760 = vmatmul.mubr.bf16.gmra.mxu0 %v1643
          %v1761 = vpop.f32.mrf.mxu0
          %v1762 = vadd.f32 0.0, %v1761
          %v1763 = vpop.f32.mrf.mxu0
          %v1764 = vpop.f32.mrf.mxu0
          %v1765 = vadd.f32 0.0, %v1764
          %v1766 = vpop.f32.mrf.mxu0
          %1767 = vmatprep.mubr.bf16.mxu0 0
          %1768 = vmatmul.mubr.bf16.gmra.mxu0 %v1645
          %v1769 = vpop.f32.mrf.mxu0
          %v1770 = vadd.f32 0.0, %v1769
          %v1771 = vpop.f32.mrf.mxu0
          %v1772 = vpop.f32.mrf.mxu0
          %v1773 = vadd.f32 0.0, %v1772
          %v1774 = vpop.f32.mrf.mxu0
          %1775 = vmatprep.mubr.bf16.mxu0 0
          %1776 = vmatmul.mubr.bf16.gmra.mxu0 %v1647
          %v1777 = vpop.f32.mrf.mxu0
          %v1778 = vadd.f32 0.0, %v1777
          %v1779 = vpop.f32.mrf.mxu0
          %v1780 = vpop.f32.mrf.mxu0
          %v1781 = vadd.f32 0.0, %v1780
          %v1782 = vpop.f32.mrf.mxu0
          %1783 = vmatprep.mubr.bf16.mxu0 0
          %1784 = vmatmul.mubr.bf16.gmra.mxu0 %v1649
          %v1785 = vpop.f32.mrf.mxu0
          %v1786 = vadd.f32 0.0, %v1785
          %v1787 = vpop.f32.mrf.mxu0
          %v1788 = vpop.f32.mrf.mxu0
          %v1789 = vadd.f32 0.0, %v1788
          %v1790 = vpop.f32.mrf.mxu0
          %1791 = vmatprep.mubr.bf16.mxu0 0
          %1792 = vmatmul.mubr.bf16.gmra.mxu0 %v1651
          %v1793 = vpop.f32.mrf.mxu0
          %v1794 = vadd.f32 0.0, %v1793
          %v1795 = vpop.f32.mrf.mxu0
          %v1796 = vpop.f32.mrf.mxu0
          %v1797 = vadd.f32 0.0, %v1796
          %v1798 = vpop.f32.mrf.mxu0
          %1799 = vmatprep.mubr.bf16.mxu0 0
          %1800 = vmatmul.mubr.bf16.gmra.mxu0 %v1653
          %v1801 = vpop.f32.mrf.mxu0
          %v1802 = vadd.f32 0.0, %v1801
          %v1803 = vpop.f32.mrf.mxu0
          %v1804 = vpop.f32.mrf.mxu0
          %v1805 = vadd.f32 0.0, %v1804
          %v1806 = vpop.f32.mrf.mxu0
          %1807 = vmatprep.mubr.bf16.mxu0 0
          %1808 = vmatmul.mubr.bf16.gmra.mxu0 %v1655
          %v1809 = vpop.f32.mrf.mxu0
          %v1810 = vadd.f32 0.0, %v1809
          %v1811 = vpop.f32.mrf.mxu0
          %v1812 = vpop.f32.mrf.mxu0
          %v1813 = vadd.f32 0.0, %v1812
          %v1814 = vpop.f32.mrf.mxu0
          %1815 = vmatprep.mubr.bf16.mxu0 0
          %1816 = vmatmul.mubr.bf16.gmra.mxu0 %v1657
          %v1817 = vpop.f32.mrf.mxu0
          %v1818 = vadd.f32 0.0, %v1817
          %v1819 = vpop.f32.mrf.mxu0
          %v1820 = vpop.f32.mrf.mxu0
          %v1821 = vadd.f32 0.0, %v1820
          %v1822 = vpop.f32.mrf.mxu0
          %1823 = vdwg.mxu0
          %s1824 = smul.u32 %s23, 256
          %s1825 = scalar_lea.vmem [#allocation2], %s1824
          %1826 = vst [vmem:[%s1825] sm:$0xff] %v1698
          %1827 = vst [vmem:[%s1825 + $0x8] sm:$0xff] %v1701
          %1828 = vst [vmem:[%s1825 + $0x10] sm:$0xff] %v1706
          %1829 = vst [vmem:[%s1825 + $0x18] sm:$0xff] %v1709
          %1830 = vst [vmem:[%s1825 + $0x20] sm:$0xff] %v1714
          %1831 = vst [vmem:[%s1825 + $0x28] sm:$0xff] %v1717
          %1832 = vst [vmem:[%s1825 + $0x30] sm:$0xff] %v1722
          %1833 = vst [vmem:[%s1825 + $0x38] sm:$0xff] %v1725
          %1834 = vst [vmem:[%s1825 + $0x40] sm:$0xff] %v1730
          %1835 = vst [vmem:[%s1825 + $0x48] sm:$0xff] %v1733
          %1836 = vst [vmem:[%s1825 + $0x50] sm:$0xff] %v1738
          %1837 = vst [vmem:[%s1825 + $0x58] sm:$0xff] %v1741
          %1838 = vst [vmem:[%s1825 + $0x60] sm:$0xff] %v1746
          %1839 = vst [vmem:[%s1825 + $0x68] sm:$0xff] %v1749
          %1840 = vst [vmem:[%s1825 + $0x70] sm:$0xff] %v1754
          %1841 = vst [vmem:[%s1825 + $0x78] sm:$0xff] %v1757
          %1842 = vst [vmem:[%s1825 + $0x80] sm:$0xff] %v1762
          %1843 = vst [vmem:[%s1825 + $0x88] sm:$0xff] %v1765
          %1844 = vst [vmem:[%s1825 + $0x90] sm:$0xff] %v1770
          %1845 = vst [vmem:[%s1825 + $0x98] sm:$0xff] %v1773
          %1846 = vst [vmem:[%s1825 + $0xa0] sm:$0xff] %v1778
          %1847 = vst [vmem:[%s1825 + $0xa8] sm:$0xff] %v1781
          %1848 = vst [vmem:[%s1825 + $0xb0] sm:$0xff] %v1786
          %1849 = vst [vmem:[%s1825 + $0xb8] sm:$0xff] %v1789
          %1850 = vst [vmem:[%s1825 + $0xc0] sm:$0xff] %v1794
          %1851 = vst [vmem:[%s1825 + $0xc8] sm:$0xff] %v1797
          %1852 = vst [vmem:[%s1825 + $0xd0] sm:$0xff] %v1802
          %1853 = vst [vmem:[%s1825 + $0xd8] sm:$0xff] %v1805
          %1854 = vst [vmem:[%s1825 + $0xe0] sm:$0xff] %v1810
          %1855 = vst [vmem:[%s1825 + $0xe8] sm:$0xff] %v1813
          %1856 = vst [vmem:[%s1825 + $0xf0] sm:$0xff] %v1818
          %1857 = vst [vmem:[%s1825 + $0xf8] sm:$0xff] %v1821
          %v1858 = vld [vmem:[#allocation3] sm:$0x1]
          %v1859 = vadd.f32 %v1698, %v1701
          %v1860 = vadd.f32 %v1859, %v1706
          %v1861 = vadd.f32 %v1860, %v1709
          %v1862 = vadd.f32 %v1861, %v1714
          %v1863 = vadd.f32 %v1862, %v1717
          %v1864 = vadd.f32 %v1863, %v1722
          %v1865 = vadd.f32 %v1864, %v1725
          %v1866 = vadd.f32 %v1865, %v1730
          %v1867 = vadd.f32 %v1866, %v1733
          %v1868 = vadd.f32 %v1867, %v1738
          %v1869 = vadd.f32 %v1868, %v1741
          %v1870 = vadd.f32 %v1869, %v1746
          %v1871 = vadd.f32 %v1870, %v1749
          %v1872 = vadd.f32 %v1871, %v1754
          %v1873 = vadd.f32 %v1872, %v1757
          %v1874 = vadd.f32 %v1873, %v1762
          %v1875 = vadd.f32 %v1874, %v1765
          %v1876 = vadd.f32 %v1875, %v1770
          %v1877 = vadd.f32 %v1876, %v1773
          %v1878 = vadd.f32 %v1877, %v1778
          %v1879 = vadd.f32 %v1878, %v1781
          %v1880 = vadd.f32 %v1879, %v1786
          %v1881 = vadd.f32 %v1880, %v1789
          %v1882 = vadd.f32 %v1881, %v1794
          %v1883 = vadd.f32 %v1882, %v1797
          %v1884 = vadd.f32 %v1883, %v1802
          %v1885 = vadd.f32 %v1884, %v1805
          %v1886 = vadd.f32 %v1885, %v1810
          %v1887 = vadd.f32 %v1886, %v1813
          %v1888 = vadd.f32 %v1887, %v1818
          %v1889 = vadd.f32 %v1888, %v1821
          %v1890 = vrot.slane %v1889, 4
          %v1891 = vadd.f32 %v1889, %v1890
          %v1892 = vrot.slane %v1891, 2
          %v1893 = vadd.f32 %v1891, %v1892
          %v1894 = vrot.slane %v1893, 1
          %v1895 = vadd.f32 %v1893, %v1894
          %v1896 = vadd.f32 %v1858, %v1895
          %1897 = vst [vmem:[#allocation3] sm:$0x1] %v1896
          %v1898 = vld [vmem:[#allocation4] sm:$0x1]
          %v1899 = vmul.f32 %v1698, %v1698
          %v1900 = vmul.f32 %v1701, %v1701
          %v1901 = vmul.f32 %v1706, %v1706
          %v1902 = vmul.f32 %v1709, %v1709
          %v1903 = vmul.f32 %v1714, %v1714
          %v1904 = vmul.f32 %v1717, %v1717
          %v1905 = vmul.f32 %v1722, %v1722
          %v1906 = vmul.f32 %v1725, %v1725
          %v1907 = vmul.f32 %v1730, %v1730
          %v1908 = vmul.f32 %v1733, %v1733
          %v1909 = vmul.f32 %v1738, %v1738
          %v1910 = vmul.f32 %v1741, %v1741
          %v1911 = vmul.f32 %v1746, %v1746
          %v1912 = vmul.f32 %v1749, %v1749
          %v1913 = vmul.f32 %v1754, %v1754
          %v1914 = vmul.f32 %v1757, %v1757
          %v1915 = vmul.f32 %v1762, %v1762
          %v1916 = vmul.f32 %v1765, %v1765
          %v1917 = vmul.f32 %v1770, %v1770
          %v1918 = vmul.f32 %v1773, %v1773
          %v1919 = vmul.f32 %v1778, %v1778
          %v1920 = vmul.f32 %v1781, %v1781
          %v1921 = vmul.f32 %v1786, %v1786
          %v1922 = vmul.f32 %v1789, %v1789
          %v1923 = vmul.f32 %v1794, %v1794
          %v1924 = vmul.f32 %v1797, %v1797
          %v1925 = vmul.f32 %v1802, %v1802
          %v1926 = vmul.f32 %v1805, %v1805
          %v1927 = vmul.f32 %v1810, %v1810
          %v1928 = vmul.f32 %v1813, %v1813
          %v1929 = vmul.f32 %v1818, %v1818
          %v1930 = vmul.f32 %v1821, %v1821
          %v1931 = vadd.f32 %v1899, %v1900
          %v1932 = vadd.f32 %v1931, %v1901
          %v1933 = vadd.f32 %v1932, %v1902
          %v1934 = vadd.f32 %v1933, %v1903
          %v1935 = vadd.f32 %v1934, %v1904
          %v1936 = vadd.f32 %v1935, %v1905
          %v1937 = vadd.f32 %v1936, %v1906
          %v1938 = vadd.f32 %v1937, %v1907
          %v1939 = vadd.f32 %v1938, %v1908
          %v1940 = vadd.f32 %v1939, %v1909
          %v1941 = vadd.f32 %v1940, %v1910
          %v1942 = vadd.f32 %v1941, %v1911
          %v1943 = vadd.f32 %v1942, %v1912
          %v1944 = vadd.f32 %v1943, %v1913
          %v1945 = vadd.f32 %v1944, %v1914
          %v1946 = vadd.f32 %v1945, %v1915
          %v1947 = vadd.f32 %v1946, %v1916
          %v1948 = vadd.f32 %v1947, %v1917
          %v1949 = vadd.f32 %v1948, %v1918
          %v1950 = vadd.f32 %v1949, %v1919
          %v1951 = vadd.f32 %v1950, %v1920
          %v1952 = vadd.f32 %v1951, %v1921
          %v1953 = vadd.f32 %v1952, %v1922
          %v1954 = vadd.f32 %v1953, %v1923
          %v1955 = vadd.f32 %v1954, %v1924
          %v1956 = vadd.f32 %v1955, %v1925
          %v1957 = vadd.f32 %v1956, %v1926
          %v1958 = vadd.f32 %v1957, %v1927
          %v1959 = vadd.f32 %v1958, %v1928
          %v1960 = vadd.f32 %v1959, %v1929
          %v1961 = vadd.f32 %v1960, %v1930
          %v1962 = vrot.slane %v1961, 4
          %v1963 = vadd.f32 %v1961, %v1962
          %v1964 = vrot.slane %v1963, 2
          %v1965 = vadd.f32 %v1963, %v1964
          %v1966 = vrot.slane %v1965, 1
          %v1967 = vadd.f32 %v1965, %v1966
          %v1968 = vadd.f32 %v1898, %v1967
          %1969 = vst [vmem:[#allocation4] sm:$0x1] %v1968
        $region40: #{tpu_custom_call.1} parent=35 // pred_fallthru
          _
        %p1970 = scmp.eq.s32.totalorder %s22, 1
        // Predicated region
        $region45: #{tpu_custom_call.1} parent=35 // pred_check
          %p1971 = pneg %p1970
        $region46: #{tpu_custom_call.1} parent=35 // pred_check_branch
          %1973 = sbr.rel (%p1971) target = $region48
        $region47: #{tpu_custom_call.1} parent=35 // pred_region
          %s1974 = smul.u32 %s23, 256
          %s1975 = scalar_lea.vmem [#allocation2], %s1974
          %v1976 = vld [vmem:[%s1975] sm:$0xff]
          %v1977 = vld [vmem:[%s1975 + $0x8] sm:$0xff]
          %v1978 = vld [vmem:[%s1975 + $0x10] sm:$0xff]
          %v1979 = vld [vmem:[%s1975 + $0x18] sm:$0xff]
          %v1980 = vld [vmem:[%s1975 + $0x20] sm:$0xff]
          %v1981 = vld [vmem:[%s1975 + $0x28] sm:$0xff]
          %v1982 = vld [vmem:[%s1975 + $0x30] sm:$0xff]
          %v1983 = vld [vmem:[%s1975 + $0x38] sm:$0xff]
          %v1984 = vld [vmem:[%s1975 + $0x40] sm:$0xff]
          %v1985 = vld [vmem:[%s1975 + $0x48] sm:$0xff]
          %v1986 = vld [vmem:[%s1975 + $0x50] sm:$0xff]
          %v1987 = vld [vmem:[%s1975 + $0x58] sm:$0xff]
          %v1988 = vld [vmem:[%s1975 + $0x60] sm:$0xff]
          %v1989 = vld [vmem:[%s1975 + $0x68] sm:$0xff]
          %v1990 = vld [vmem:[%s1975 + $0x70] sm:$0xff]
          %v1991 = vld [vmem:[%s1975 + $0x78] sm:$0xff]
          %v1992 = vld [vmem:[%s1975 + $0x80] sm:$0xff]
          %v1993 = vld [vmem:[%s1975 + $0x88] sm:$0xff]
          %v1994 = vld [vmem:[%s1975 + $0x90] sm:$0xff]
          %v1995 = vld [vmem:[%s1975 + $0x98] sm:$0xff]
          %v1996 = vld [vmem:[%s1975 + $0xa0] sm:$0xff]
          %v1997 = vld [vmem:[%s1975 + $0xa8] sm:$0xff]
          %v1998 = vld [vmem:[%s1975 + $0xb0] sm:$0xff]
          %v1999 = vld [vmem:[%s1975 + $0xb8] sm:$0xff]
          %v2000 = vld [vmem:[%s1975 + $0xc0] sm:$0xff]
          %v2001 = vld [vmem:[%s1975 + $0xc8] sm:$0xff]
          %v2002 = vld [vmem:[%s1975 + $0xd0] sm:$0xff]
          %v2003 = vld [vmem:[%s1975 + $0xd8] sm:$0xff]
          %v2004 = vld [vmem:[%s1975 + $0xe0] sm:$0xff]
          %v2005 = vld [vmem:[%s1975 + $0xe8] sm:$0xff]
          %v2006 = vld [vmem:[%s1975 + $0xf0] sm:$0xff]
          %v2007 = vld [vmem:[%s1975 + $0xf8] sm:$0xff]
          %v2008 = vld [vmem:[#allocation3] sm:$0x1]
          %v2009 = vmul.f32 %v2008, 0.001953125
          %v2010 = vld [vmem:[#allocation4] sm:$0x1]
          %v2011 = vmul.f32 %v2010, 0.001953125
          %v2012 = vmul.f32 %v2009, %v2009
          %v2013 = vsub.f32 %v2011, %v2012
          %v2014 = vmax.f32 %v2013, 0.0
          %v2015 = vld [vmem:[%s2] sm:$0x1]
          %v2016 = vadd.f32 %v2014, 1e-05
          %v2017 = vrsqrt.pop %v2016
          %v2018 = vmul.f32 %v2015, %v2017
          %v2019 = vld [vmem:[%s3] sm:$0x1]
          %v2020 = vmul.f32 %v2009, %v2018
          %v2021 = vsub.f32 %v2019, %v2020
          %v2023 = vlaneseq
          %v2024 = vshrl.u32 %v2023, 7
          %v2025 = vsub.s32 0, %v2024
          %v2026 = vrot.slane %v2018, %v2025
          %v2028 = vmul.f32 %v1976, %v2026
          %v2029 = vmul.f32 %v1977, %v2026
          %v2030 = vmul.f32 %v1978, %v2026
          %v2031 = vmul.f32 %v1979, %v2026
          %v2032 = vmul.f32 %v1980, %v2026
          %v2033 = vmul.f32 %v1981, %v2026
          %v2034 = vmul.f32 %v1982, %v2026
          %v2035 = vmul.f32 %v1983, %v2026
          %v2036 = vmul.f32 %v1984, %v2026
          %v2037 = vmul.f32 %v1985, %v2026
          %v2038 = vmul.f32 %v1986, %v2026
          %v2039 = vmul.f32 %v1987, %v2026
          %v2040 = vmul.f32 %v1988, %v2026
          %v2041 = vmul.f32 %v1989, %v2026
          %v2042 = vmul.f32 %v1990, %v2026
          %v2043 = vmul.f32 %v1991, %v2026
          %v2044 = vmul.f32 %v1992, %v2026
          %v2045 = vmul.f32 %v1993, %v2026
          %v2046 = vmul.f32 %v1994, %v2026
          %v2047 = vmul.f32 %v1995, %v2026
          %v2048 = vmul.f32 %v1996, %v2026
          %v2049 = vmul.f32 %v1997, %v2026
          %v2050 = vmul.f32 %v1998, %v2026
          %v2051 = vmul.f32 %v1999, %v2026
          %v2052 = vmul.f32 %v2000, %v2026
          %v2053 = vmul.f32 %v2001, %v2026
          %v2054 = vmul.f32 %v2002, %v2026
          %v2055 = vmul.f32 %v2003, %v2026
          %v2056 = vmul.f32 %v2004, %v2026
          %v2057 = vmul.f32 %v2005, %v2026
          %v2058 = vmul.f32 %v2006, %v2026
          %v2059 = vmul.f32 %v2007, %v2026
          %v2061 = vlaneseq
          %v2062 = vshrl.u32 %v2061, 7
          %v2063 = vsub.s32 0, %v2062
          %v2064 = vrot.slane %v2021, %v2063
          %v2066 = vadd.f32 %v2028, %v2064
          %v2067 = vadd.f32 %v2029, %v2064
          %v2068 = vadd.f32 %v2030, %v2064
          %v2069 = vadd.f32 %v2031, %v2064
          %v2070 = vadd.f32 %v2032, %v2064
          %v2071 = vadd.f32 %v2033, %v2064
          %v2072 = vadd.f32 %v2034, %v2064
          %v2073 = vadd.f32 %v2035, %v2064
          %v2074 = vadd.f32 %v2036, %v2064
          %v2075 = vadd.f32 %v2037, %v2064
          %v2076 = vadd.f32 %v2038, %v2064
          %v2077 = vadd.f32 %v2039, %v2064
          %v2078 = vadd.f32 %v2040, %v2064
          %v2079 = vadd.f32 %v2041, %v2064
          %v2080 = vadd.f32 %v2042, %v2064
          %v2081 = vadd.f32 %v2043, %v2064
          %v2082 = vadd.f32 %v2044, %v2064
          %v2083 = vadd.f32 %v2045, %v2064
          %v2084 = vadd.f32 %v2046, %v2064
          %v2085 = vadd.f32 %v2047, %v2064
          %v2086 = vadd.f32 %v2048, %v2064
          %v2087 = vadd.f32 %v2049, %v2064
          %v2088 = vadd.f32 %v2050, %v2064
          %v2089 = vadd.f32 %v2051, %v2064
          %v2090 = vadd.f32 %v2052, %v2064
          %v2091 = vadd.f32 %v2053, %v2064
          %v2092 = vadd.f32 %v2054, %v2064
          %v2093 = vadd.f32 %v2055, %v2064
          %v2094 = vadd.f32 %v2056, %v2064
          %v2095 = vadd.f32 %v2057, %v2064
          %v2096 = vadd.f32 %v2058, %v2064
          %v2097 = vadd.f32 %v2059, %v2064
          %vm2098 = vcmp.ge.f32.partialorder %v2066, 0.0
          %vm2099 = vcmp.ge.f32.partialorder %v2067, 0.0
          %vm2100 = vcmp.ge.f32.partialorder %v2068, 0.0
          %vm2101 = vcmp.ge.f32.partialorder %v2069, 0.0
          %vm2102 = vcmp.ge.f32.partialorder %v2070, 0.0
          %vm2103 = vcmp.ge.f32.partialorder %v2071, 0.0
          %vm2104 = vcmp.ge.f32.partialorder %v2072, 0.0
          %vm2105 = vcmp.ge.f32.partialorder %v2073, 0.0
          %vm2106 = vcmp.ge.f32.partialorder %v2074, 0.0
          %vm2107 = vcmp.ge.f32.partialorder %v2075, 0.0
          %vm2108 = vcmp.ge.f32.partialorder %v2076, 0.0
          %vm2109 = vcmp.ge.f32.partialorder %v2077, 0.0
          %vm2110 = vcmp.ge.f32.partialorder %v2078, 0.0
          %vm2111 = vcmp.ge.f32.partialorder %v2079, 0.0
          %vm2112 = vcmp.ge.f32.partialorder %v2080, 0.0
          %vm2113 = vcmp.ge.f32.partialorder %v2081, 0.0
          %vm2114 = vcmp.ge.f32.partialorder %v2082, 0.0
          %vm2115 = vcmp.ge.f32.partialorder %v2083, 0.0
          %vm2116 = vcmp.ge.f32.partialorder %v2084, 0.0
          %vm2117 = vcmp.ge.f32.partialorder %v2085, 0.0
          %vm2118 = vcmp.ge.f32.partialorder %v2086, 0.0
          %vm2119 = vcmp.ge.f32.partialorder %v2087, 0.0
          %vm2120 = vcmp.ge.f32.partialorder %v2088, 0.0
          %vm2121 = vcmp.ge.f32.partialorder %v2089, 0.0
          %vm2122 = vcmp.ge.f32.partialorder %v2090, 0.0
          %vm2123 = vcmp.ge.f32.partialorder %v2091, 0.0
          %vm2124 = vcmp.ge.f32.partialorder %v2092, 0.0
          %vm2125 = vcmp.ge.f32.partialorder %v2093, 0.0
          %vm2126 = vcmp.ge.f32.partialorder %v2094, 0.0
          %vm2127 = vcmp.ge.f32.partialorder %v2095, 0.0
          %vm2128 = vcmp.ge.f32.partialorder %v2096, 0.0
          %vm2129 = vcmp.ge.f32.partialorder %v2097, 0.0
          %v2130 = vmul.f32 %v2066, 0.01
          %v2131 = vmul.f32 %v2067, 0.01
          %v2132 = vmul.f32 %v2068, 0.01
          %v2133 = vmul.f32 %v2069, 0.01
          %v2134 = vmul.f32 %v2070, 0.01
          %v2135 = vmul.f32 %v2071, 0.01
          %v2136 = vmul.f32 %v2072, 0.01
          %v2137 = vmul.f32 %v2073, 0.01
          %v2138 = vmul.f32 %v2074, 0.01
          %v2139 = vmul.f32 %v2075, 0.01
          %v2140 = vmul.f32 %v2076, 0.01
          %v2141 = vmul.f32 %v2077, 0.01
          %v2142 = vmul.f32 %v2078, 0.01
          %v2143 = vmul.f32 %v2079, 0.01
          %v2144 = vmul.f32 %v2080, 0.01
          %v2145 = vmul.f32 %v2081, 0.01
          %v2146 = vmul.f32 %v2082, 0.01
          %v2147 = vmul.f32 %v2083, 0.01
          %v2148 = vmul.f32 %v2084, 0.01
          %v2149 = vmul.f32 %v2085, 0.01
          %v2150 = vmul.f32 %v2086, 0.01
          %v2151 = vmul.f32 %v2087, 0.01
          %v2152 = vmul.f32 %v2088, 0.01
          %v2153 = vmul.f32 %v2089, 0.01
          %v2154 = vmul.f32 %v2090, 0.01
          %v2155 = vmul.f32 %v2091, 0.01
          %v2156 = vmul.f32 %v2092, 0.01
          %v2157 = vmul.f32 %v2093, 0.01
          %v2158 = vmul.f32 %v2094, 0.01
          %v2159 = vmul.f32 %v2095, 0.01
          %v2160 = vmul.f32 %v2096, 0.01
          %v2161 = vmul.f32 %v2097, 0.01
          %v2162 = vsel %vm2098, %v2066, %v2130
          %v2163 = vsel %vm2099, %v2067, %v2131
          %v2164 = vsel %vm2100, %v2068, %v2132
          %v2165 = vsel %vm2101, %v2069, %v2133
          %v2166 = vsel %vm2102, %v2070, %v2134
          %v2167 = vsel %vm2103, %v2071, %v2135
          %v2168 = vsel %vm2104, %v2072, %v2136
          %v2169 = vsel %vm2105, %v2073, %v2137
          %v2170 = vsel %vm2106, %v2074, %v2138
          %v2171 = vsel %vm2107, %v2075, %v2139
          %v2172 = vsel %vm2108, %v2076, %v2140
          %v2173 = vsel %vm2109, %v2077, %v2141
          %v2174 = vsel %vm2110, %v2078, %v2142
          %v2175 = vsel %vm2111, %v2079, %v2143
          %v2176 = vsel %vm2112, %v2080, %v2144
          %v2177 = vsel %vm2113, %v2081, %v2145
          %v2178 = vsel %vm2114, %v2082, %v2146
          %v2179 = vsel %vm2115, %v2083, %v2147
          %v2180 = vsel %vm2116, %v2084, %v2148
          %v2181 = vsel %vm2117, %v2085, %v2149
          %v2182 = vsel %vm2118, %v2086, %v2150
          %v2183 = vsel %vm2119, %v2087, %v2151
          %v2184 = vsel %vm2120, %v2088, %v2152
          %v2185 = vsel %vm2121, %v2089, %v2153
          %v2186 = vsel %vm2122, %v2090, %v2154
          %v2187 = vsel %vm2123, %v2091, %v2155
          %v2188 = vsel %vm2124, %v2092, %v2156
          %v2189 = vsel %vm2125, %v2093, %v2157
          %v2190 = vsel %vm2126, %v2094, %v2158
          %v2191 = vsel %vm2127, %v2095, %v2159
          %v2192 = vsel %vm2128, %v2096, %v2160
          %v2193 = vsel %vm2129, %v2097, %v2161
          %2194 = vxpose.xlu0.b32.start [1/16] %v2162, 128
          %2195 = vxpose.xlu0.b32.cont [2/16] %v2163, 128
          %2196 = vxpose.xlu0.b32.cont [3/16] %v2164, 128
          %2197 = vxpose.xlu0.b32.cont [4/16] %v2165, 128
          %2198 = vxpose.xlu0.b32.cont [5/16] %v2166, 128
          %2199 = vxpose.xlu0.b32.cont [6/16] %v2167, 128
          %2200 = vxpose.xlu0.b32.cont [7/16] %v2168, 128
          %2201 = vxpose.xlu0.b32.cont [8/16] %v2169, 128
          %2202 = vxpose.xlu0.b32.cont [9/16] %v2170, 128
          %2203 = vxpose.xlu0.b32.cont [10/16] %v2171, 128
          %2204 = vxpose.xlu0.b32.cont [11/16] %v2172, 128
          %2205 = vxpose.xlu0.b32.cont [12/16] %v2173, 128
          %2206 = vxpose.xlu0.b32.cont [13/16] %v2174, 128
          %2207 = vxpose.xlu0.b32.cont [14/16] %v2175, 128
          %2208 = vxpose.xlu0.b32.cont [15/16] %v2176, 128
          %2209 = vxpose.xlu0.b32.end [16/16] %v2177, 128
          %v2210 = vpop.trf.xlu0
          %v2211 = vpop.trf.xlu0
          %v2212 = vpop.trf.xlu0
          %v2213 = vpop.trf.xlu0
          %v2214 = vpop.trf.xlu0
          %v2215 = vpop.trf.xlu0
          %v2216 = vpop.trf.xlu0
          %v2217 = vpop.trf.xlu0
          %v2218 = vpop.trf.xlu0
          %v2219 = vpop.trf.xlu0
          %v2220 = vpop.trf.xlu0
          %v2221 = vpop.trf.xlu0
          %v2222 = vpop.trf.xlu0
          %v2223 = vpop.trf.xlu0
          %v2224 = vpop.trf.xlu0
          %v2225 = vpop.trf.xlu0
          %2226 = vxpose.xlu0.b32.start [1/16] %v2178, 128
          %2227 = vxpose.xlu0.b32.cont [2/16] %v2179, 128
          %2228 = vxpose.xlu0.b32.cont [3/16] %v2180, 128
          %2229 = vxpose.xlu0.b32.cont [4/16] %v2181, 128
          %2230 = vxpose.xlu0.b32.cont [5/16] %v2182, 128
          %2231 = vxpose.xlu0.b32.cont [6/16] %v2183, 128
          %2232 = vxpose.xlu0.b32.cont [7/16] %v2184, 128
          %2233 = vxpose.xlu0.b32.cont [8/16] %v2185, 128
          %2234 = vxpose.xlu0.b32.cont [9/16] %v2186, 128
          %2235 = vxpose.xlu0.b32.cont [10/16] %v2187, 128
          %2236 = vxpose.xlu0.b32.cont [11/16] %v2188, 128
          %2237 = vxpose.xlu0.b32.cont [12/16] %v2189, 128
          %2238 = vxpose.xlu0.b32.cont [13/16] %v2190, 128
          %2239 = vxpose.xlu0.b32.cont [14/16] %v2191, 128
          %2240 = vxpose.xlu0.b32.cont [15/16] %v2192, 128
          %2241 = vxpose.xlu0.b32.end [16/16] %v2193, 128
          %v2242 = vpop.trf.xlu0
          %v2243 = vpop.trf.xlu0
          %v2244 = vpop.trf.xlu0
          %v2245 = vpop.trf.xlu0
          %v2246 = vpop.trf.xlu0
          %v2247 = vpop.trf.xlu0
          %v2248 = vpop.trf.xlu0
          %v2249 = vpop.trf.xlu0
          %v2250 = vpop.trf.xlu0
          %v2251 = vpop.trf.xlu0
          %v2252 = vpop.trf.xlu0
          %v2253 = vpop.trf.xlu0
          %v2254 = vpop.trf.xlu0
          %v2255 = vpop.trf.xlu0
          %v2256 = vpop.trf.xlu0
          %v2257 = vpop.trf.xlu0
          %2258 = vst [vmem:[%s214] sm:$0xff] %v2210
          %2259 = vst [vmem:[%s214 + $0x8] sm:$0xff] %v2242
        $region48: #{tpu_custom_call.1} parent=35 // pred_fallthru
          _
        %s2260 = sand.u32 %s133, 1
        %s2261 = scalar_lea.sflag [#allocation6], %s2260
        %s2262 = sand.u32 %s133, 1
        %s2263 = smul.addr %s2262, 16
        %s2264 = scalar_lea.vmem [#allocation5], %s2263
        // Predicated region
        $region49: #{tpu_custom_call.1} parent=35 // pred_check
          %p2265 = pneg %p143
        $region50: #{tpu_custom_call.1} parent=35 // pred_check_branch
          %2267 = sbr.rel (%p2265) target = $region52
        $region51: #{tpu_custom_call.1} parent=35 // pred_region
          %s2268 = smul.u32 %s23, %s22
          %s2270 = ssub.s32 256, 256
          %2271 = vsyncadd %s2261, %s2270
          %s2272 = smul.addr %s2268, 2
          %s2273 = smul.addr %s2272, 128
          %s2274 = scalar_lea.hbm %s4, %s2273
          %s2276 = sshll.u32 %s2264, 4
          %s2277 = int_to_ptr.vmem [resolvable:$true] %s2276
          %2279 = dma.vmem_to_hbm [thread:$0]  %s2277, 256, %s2274, %s2261
        $region52: #{tpu_custom_call.1} parent=35 // pred_fallthru
          _
      $region36: #{tpu_custom_call.1} parent=5 // pred_fallthru
        _
      %p2280 = scmp.le.s32.totalorder 2, %s13
      // Predicated region
      $region53: #{tpu_custom_call.1} parent=5 // pred_check
        %p2281 = pneg %p2280
      $region54: #{tpu_custom_call.1} parent=5 // pred_check_branch
        %2283 = sbr.rel (%p2281) target = $region56
      $region55: #{tpu_custom_call.1} parent=5 // pred_region
        %s2284 = ssub.s32 %s13, 2
        // Predicated region
        $region57: #{tpu_custom_call.1} parent=55 // pred_check
          %p2285 = pneg %p149
        $region58: #{tpu_custom_call.1} parent=55 // pred_check_branch
          %2287 = sbr.rel (%p2285) target = $region60
        $region59: #{tpu_custom_call.1} parent=55 // pred_region
          %s2288 = sand.u32 %s134, 1
          %s2289 = scalar_lea.sflag [#allocation6], %s2288
          %s2290 = sand.u32 %s134, 1
          %s2291 = smul.addr %s2290, 16
          %s2292 = scalar_lea.vmem [#allocation5], %s2291
          %2293 = dma.done %s2289, 256
        $region60: #{tpu_custom_call.1} parent=55 // pred_fallthru
          _
      $region56: #{tpu_custom_call.1} parent=5 // pred_fallthru
        _
    $region6: #{tpu_custom_call.1} parent=1 // loop_footer
      %s17 = sadd.s32 1, %s13
    $region7: #{tpu_custom_call.1} parent=1 // loop_footer_branch
      %12 = sbr.rel target = $region3
    $region8: #{tpu_custom_call.1} parent=1 // loop_exit
      _
    %2294 = vsyncpa [#allocation6], 1
    %s2295 = scalar_lea.sflag [#allocation6], 1
    %2296 = vsyncpa %s2295, 1

</llo_original>
